<compile_context>
chip_gen: v5e
topology: v5e:2x2
jax: 0.10.0
libtpu: 0.0.40
codegen_flags: <defaults>
</compile_context>

<pallas_src>
import functools

import jax
import jax.numpy as jnp
from jax.experimental import pallas as pl
from jax.experimental.pallas import tpu as pltpu

MOD_EPS = 1e-8   # Conv2DMod demodulation eps
BN_EPS = 1e-5    # nn.BatchNorm2d default eps


def _mish_fast(x, approx_recip):
    # mish(x) = x * tanh(softplus(x)).  For x <= 20 (PyTorch softplus threshold):
    #   tanh(log(1+e)) = ((1+e)^2 - 1) / ((1+e)^2 + 1),  e = exp(x)
    # -> one EUP exp, and on the fast path one EUP approximate reciprocal (no VPU divide).
    e = jnp.exp(jnp.minimum(x, 20.0))
    t = (1.0 + e) * (1.0 + e)
    num = x * (t - 1.0)
    if approx_recip:
        y = num * pl.reciprocal(t + 1.0, approx=True)
    else:
        y = num / (t + 1.0)
    return jnp.where(x > 20.0, x, y)


def _mish_ref(x):
    # Reference form (matches PyTorch: softplus with threshold=20, then tanh).
    sp = jnp.where(x > 20.0, x, jnp.log(1.0 + jnp.exp(jnp.minimum(x, 20.0))))
    return x * jnp.tanh(sp)


def _down_double_style_kernel(xpp_ref, scl1_ref, w1_ref, scl2_ref, w2_ref,
                              wsc_ref, bsc_ref, o_ref, pad_ref, *, approx_recip):
    # xpp_ref : (1, H2+4, W2+2, nc1)  pooled input, zero pad (2,2) rows / (1,1) cols, cdt
    # scl*    : (1, nc_in, nc_out) f32 per-sample mod_in * dem_out scale tables
    # w1/w2   : (3, 3, n_in, n_out) cdt;  wsc: (nc1, nc2) cdt;  bsc: (1, nc2) f32 (BN folded)
    # o_ref   : (1, TH, W2, nc2) cdt;  pad_ref: (TH+2, W2+9, nc2) cdt scratch
    TH, W2, nc2 = o_ref.shape[1], o_ref.shape[2], o_ref.shape[3]
    nc1 = xpp_ref.shape[3]
    cdt = o_ref.dtype                                   # MXU compute dtype

    r = pl.program_id(1)
    r0 = pl.multiple_of(r * TH, TH)

    # ---- fold per-sample modulation / demodulation into the tiny conv weights ----
    w1_eff = (w1_ref[...] * scl1_ref[0]).astype(cdt)    # (3,3,nc1,nc2)
    w2_eff = (w2_ref[...] * scl2_ref[0]).astype(cdt)    # (3,3,nc2,nc2)

    def conv3x3(xwin, w_eff, n_in, n_out, rows):
        # xwin: (rows+2, W2+2, n_in) cdt; 'valid' 3x3 conv -> (rows, W2, n_out) f32.
        # kw shifts hoisted out of the kh loop: 3 shifted copies per conv; the kh row
        # slices are leading-axis (cheap) and reshape contiguously.
        acc = jnp.zeros((rows * W2, n_out), jnp.float32)
        for kw in range(3):
            xs = xwin[:, kw:kw + W2, :]                 # (rows+2, W2, n_in)
            for kh in range(3):
                patch = xs[kh:kh + rows].reshape(rows * W2, n_in)
                acc = acc + jnp.dot(patch, w_eff[kh, kw],
                                    preferred_element_type=jnp.float32)
        return acc.reshape(rows, W2, n_out)

    # ---- main1: StyleBlock(nc1 -> nc2) over TH+2 rows (1-row halo for conv2) ----
    xw = xpp_ref[0, pl.ds(r0, TH + 4)]                  # (TH+4, W2+2, nc1) cdt
    out1 = _mish_fast(conv3x3(xw, w1_eff, nc1, nc2, TH + 2), approx_recip)

    # ---- main2: build conv2's zero-padded input in scratch (interior aligned at col 8) ----
    pad_ref[:, 7:8, :] = jnp.zeros((TH + 2, 1, nc2), cdt)
    pad_ref[:, W2 + 8:W2 + 9, :] = jnp.zeros((TH + 2, 1, nc2), cdt)
    pad_ref[:, 8:8 + W2, :] = out1.astype(cdt)

    @pl.when(r == 0)                                    # global top padding row
    def _():
        pad_ref[0:1, 7:W2 + 9, :] = jnp.zeros((1, W2 + 2, nc2), cdt)

    @pl.when(r == pl.num_programs(1) - 1)               # global bottom padding row
    def _():
        pad_ref[TH + 1:TH + 2, 7:W2 + 9, :] = jnp.zeros((1, W2 + 2, nc2), cdt)

    xw2 = pad_ref[:, 7:W2 + 9, :]                       # (TH+2, W2+2, nc2) cdt
    out2 = _mish_fast(conv3x3(xw2, w2_eff, nc2, nc2, TH), approx_recip)

    # ---- shortcut: 1x1 conv with eval-mode BatchNorm folded in, then mish ----
    xc = xw[2:TH + 2, 1:W2 + 1, :].reshape(TH * W2, nc1)
    sc = jnp.dot(xc, wsc_ref[...], preferred_element_type=jnp.float32) + bsc_ref[...]
    sc = _mish_fast(sc, approx_recip)

    o_ref[0] = (out2 + sc.reshape(TH, W2, nc2)).astype(cdt)


def _pick_row_tile(h2):
    if h2 <= 32:
        return h2
    for cand in (32, 16, 8, 4, 2):
        if h2 % cand == 0:
            return cand
    return h2


def _vmem_capacity_bytes():
    try:
        cap = getattr(pltpu.get_tpu_info(), "vmem_capacity_bytes", None)
        if cap:
            return int(cap)
    except Exception:
        pass
    return 64 * 1024 * 1024


def down_double_style_block(x_nchw, z, params, *, use_bf16=True,
                            nchw_output=True, row_tile=None):
    """DownDoubleStyleBlock.forward(x, z).  x: (B, nc1, H, W) NCHW, z: (B, z_dims)."""
    B, nc1, H, W = x_nchw.shape
    nc2 = params["w1_oihw"].shape[0]
    H2, W2 = H // 2, W // 2
    cdt = jnp.bfloat16 if use_bf16 else jnp.float32
    hi = jax.lax.Precision.HIGHEST

    TH = _pick_row_tile(H2) if row_tile is None else int(row_tile)
    assert H2 % TH == 0, (H2, TH)
    NR = H2 // TH

    # --- cheap glue (plain JAX): AvgPool2d(2), NCHW->NHWC, zero pad.  2 rows / 1 col of
    #     padding per side: the extra row lets each row tile recompute its 1-row out1
    #     halo without going out of bounds. ---
    xp = x_nchw.reshape(B, nc1, H2, 2, W2, 2).mean(axis=(3, 5))
    xp_nhwc = jnp.transpose(xp, (0, 2, 3, 1))
    xpp = jnp.pad(xp_nhwc, ((0, 0), (2, 2), (1, 1), (0, 0))).astype(cdt)
    # TODO(synk): the pool/pad could be fused into the kernel (one less HBM pass); kept
    # in XLA here to keep the row-tiled DMA windows simple.

    # --- hoisted style linears + demodulation, folded into per-sample scale tables ---
    w1_k = jnp.transpose(params["w1_oihw"], (2, 3, 1, 0))      # (3,3,nc1,nc2) f32
    w2_k = jnp.transpose(params["w2_oihw"], (2, 3, 1, 0))      # (3,3,nc2,nc2) f32
    mod1 = z @ params["ws1"].T + params["bs1"] + 1.0           # (B, nc1)
    mod2 = z @ params["ws2"].T + params["bs2"] + 1.0           # (B, nc2)
    wsq1 = jnp.sum(w1_k * w1_k, axis=(0, 1))                   # (nc1, nc2)
    wsq2 = jnp.sum(w2_k * w2_k, axis=(0, 1))                   # (nc2, nc2)
    dem1 = jax.lax.rsqrt(
        jnp.einsum("bi,io->bo", mod1 * mod1, wsq1, precision=hi) + MOD_EPS)
    dem2 = jax.lax.rsqrt(
        jnp.einsum("bi,io->bo", mod2 * mod2, wsq2, precision=hi) + MOD_EPS)
    scl1 = (mod1[:, :, None] * dem1[:, None, :]).astype(jnp.float32)   # (B,nc1,nc2)
    scl2 = (mod2[:, :, None] * dem2[:, None, :]).astype(jnp.float32)   # (B,nc2,nc2)

    # --- shortcut: fold eval-mode BatchNorm into the 1x1 conv weights/bias ---
    # TODO(synk): ConvBlock internals not shown in the source; assumed
    # Conv2d(k=1, bias=True) -> BatchNorm2d(eval) -> mish.
    bn_scale = params["bn_gamma"] / jnp.sqrt(params["bn_var"] + BN_EPS)
    bn_shift = params["bn_beta"] - params["bn_mean"] * bn_scale
    wsc = params["wsc_oihw"][:, :, 0, 0].T                     # (nc1, nc2)
    wsc_c = (wsc * bn_scale[None, :]).astype(cdt)
    bsc_eff = (params["bsc"] * bn_scale + bn_shift).reshape(1, nc2).astype(jnp.float32)

    w1_c, w2_c = w1_k.astype(cdt), w2_k.astype(cdt)

    # --- VMEM budget: double-buffered blocks + scratch + in-kernel intermediates ---
    itm = jnp.dtype(cdt).itemsize
    blk = ((H2 + 4) * (W2 + 2) * nc1 * itm                     # xpp (whole sample)
           + (nc1 + nc2) * nc2 * 4                             # scl1, scl2
           + 9 * nc1 * nc2 * itm + 9 * nc2 * nc2 * itm         # w1, w2
           + nc1 * nc2 * itm + nc2 * 4                         # wsc, bsc
           + TH * W2 * nc2 * itm)                              # output tile
    inter = ((TH + 2) * W2 * nc2 * 4                           # out1 (f32)
             + 2 * TH * W2 * nc2 * 4                           # out2 + shortcut (f32)
             + 3 * (TH + 4) * W2 * max(nc1, nc2) * itm         # kw-shifted copies
             + 9 * (nc1 + nc2) * nc2 * 4)                      # folded-weight temps
    est = 2 * blk + (TH + 2) * (W2 + 9) * nc2 * itm + inter
    vmem_limit = int(min(max(1.5 * est, 32 * 1024 * 1024), _vmem_capacity_bytes()))

    grid_spec = pltpu.PrefetchScalarGridSpec(
        num_scalar_prefetch=0,
        grid=(B, NR),
        in_specs=[
            pl.BlockSpec((1, H2 + 4, W2 + 2, nc1), lambda b, r: (b, 0, 0, 0)),
            pl.BlockSpec((1, nc1, nc2), lambda b, r: (b, 0, 0)),
            pl.BlockSpec((3, 3, nc1, nc2), lambda b, r: (0, 0, 0, 0)),
            pl.BlockSpec((1, nc2, nc2), lambda b, r: (b, 0, 0)),
            pl.BlockSpec((3, 3, nc2, nc2), lambda b, r: (0, 0, 0, 0)),
            pl.BlockSpec((nc1, nc2), lambda b, r: (0, 0)),
            pl.BlockSpec((1, nc2), lambda b, r: (0, 0)),
        ],
        out_specs=pl.BlockSpec((1, TH, W2, nc2), lambda b, r: (b, r, 0, 0)),
        scratch_shapes=[pltpu.VMEM((TH + 2, W2 + 9, nc2), cdt)],
    )

    out_nhwc = pl.pallas_call(
        functools.partial(_down_double_style_kernel, approx_recip=use_bf16),
        out_shape=jax.ShapeDtypeStruct((B, H2, W2, nc2), cdt),
        grid_spec=grid_spec,
        compiler_params=pltpu.CompilerParams(
            dimension_semantics=("parallel", "parallel"),   # samples & row tiles independent
            vmem_limit_bytes=vmem_limit),
    )(xpp, scl1, w1_c, scl2, w2_c, wsc_c, bsc_eff)

    if nchw_output:
        return jnp.transpose(out_nhwc, (0, 3, 1, 2))          # module semantics (NCHW)
    return out_nhwc                                           # lane-dense fast path


def reference_forward(x_nchw, z, params):
    """Pure-JAX reference mirroring the PyTorch module (per-sample modulated weights)."""
    B, nc1, H, W = x_nchw.shape
    H2, W2 = H // 2, W // 2
    xp = x_nchw.reshape(B, nc1, H2, 2, W2, 2).mean(axis=(3, 5))

    def conv2dmod(xb, style, w_oihw):
        wm = w_oihw * (style[None, :, None, None] + 1.0)
        d = jax.lax.rsqrt(jnp.sum(wm * wm, axis=(1, 2, 3), keepdims=True) + MOD_EPS)
        wf = wm * d
        out = jax.lax.conv_general_dilated(
            xb[None], wf, window_strides=(1, 1), padding="SAME",
            dimension_numbers=("NCHW", "OIHW", "NCHW"),
            precision=jax.lax.Precision.HIGHEST)
        return out[0]

    s1 = z @ params["ws1"].T + params["bs1"]
    s2 = z @ params["ws2"].T + params["bs2"]
    bn_scale = params["bn_gamma"] / jnp.sqrt(params["bn_var"] + BN_EPS)
    bn_shift = params["bn_beta"] - params["bn_mean"] * bn_scale
    wsc = params["wsc_oihw"][:, :, 0, 0]                      # (nc2, nc1)
    outs = []
    for b in range(B):
        o1 = _mish_ref(conv2dmod(xp[b], s1[b], params["w1_oihw"]))
        o2 = _mish_ref(conv2dmod(o1, s2[b], params["w2_oihw"]))
        sc = jnp.einsum("oi,ihw->ohw", wsc, xp[b],
                        precision=jax.lax.Precision.HIGHEST)
        sc = sc + params["bsc"][:, None, None]
        sc = sc * bn_scale[:, None, None] + bn_shift[:, None, None]
        sc = _mish_ref(sc)
        outs.append(o2 + sc)
    return jnp.stack(outs)


if __name__ == "__main__":
    B, nc1, nc2, z_dims, H, W = 2, 4, 8, 16, 16, 16
    key = jax.random.PRNGKey(0)
    ks = jax.random.split(key, 10)
    params = {
        "w1_oihw": 0.25 * jax.random.normal(ks[0], (nc2, nc1, 3, 3), jnp.float32),
        "w2_oihw": 0.25 * jax.random.normal(ks[1], (nc2, nc2, 3, 3), jnp.float32),
        "ws1": 0.25 * jax.random.normal(ks[2], (nc1, z_dims), jnp.float32),
        "bs1": 0.1 * jax.random.normal(ks[3], (nc1,), jnp.float32),
        "ws2": 0.25 * jax.random.normal(ks[4], (nc2, z_dims), jnp.float32),
        "bs2": 0.1 * jax.random.normal(ks[5], (nc2,), jnp.float32),
        "wsc_oihw": 0.25 * jax.random.normal(ks[6], (nc2, nc1, 1, 1), jnp.float32),
        "bsc": 0.1 * jax.random.normal(ks[7], (nc2,), jnp.float32),
        # BatchNorm2d(eval) running stats assumed default (see TODO above).
        "bn_gamma": jnp.ones((nc2,), jnp.float32),
        "bn_beta": jnp.zeros((nc2,), jnp.float32),
        "bn_mean": jnp.zeros((nc2,), jnp.float32),
        "bn_var": jnp.ones((nc2,), jnp.float32),
    }
    x = jax.random.normal(ks[8], (B, nc1, H, W), jnp.float32)
    z = jax.random.normal(ks[9], (B, z_dims), jnp.float32)

    ref = jax.block_until_ready(reference_forward(x, z, params))

    # f32 MXU path with explicit row tiling (NR=2): tight check of kernel + halo logic.
    out_f32 = jax.block_until_ready(
        down_double_style_block(x, z, params, use_bf16=False, row_tile=4))
    assert out_f32.shape == (B, nc2, H // 2, W // 2), out_f32.shape
    assert bool(jnp.all(jnp.isfinite(out_f32)))
    assert bool(jnp.allclose(out_f32, ref, atol=2e-3, rtol=2e-3)), \
        float(jnp.max(jnp.abs(out_f32 - ref)))

    # bf16 fast path (defaults): bf16 MXU inputs + f32 accumulation, bf16 output.
    out_bf16 = jax.block_until_ready(down_double_style_block(x, z, params))
    assert out_bf16.shape == (B, nc2, H // 2, W // 2), out_bf16.shape
    out_bf16_f = out_bf16.astype(jnp.float32)
    assert bool(jnp.all(jnp.isfinite(out_bf16_f)))
    assert bool(jnp.allclose(out_bf16_f, ref, atol=3e-2, rtol=3e-2)), \
        float(jnp.max(jnp.abs(out_bf16_f - ref)))

    # bf16 + NHWC output + row tiling (no final transpose pass): exercise the fast layout.
    out_nhwc = jax.block_until_ready(
        down_double_style_block(x, z, params, nchw_output=False, row_tile=4))
    assert out_nhwc.shape == (B, H // 2, W // 2, nc2), out_nhwc.shape
    ref_nhwc = jnp.transpose(ref, (0, 2, 3, 1))
    assert bool(jnp.allclose(out_nhwc.astype(jnp.float32), ref_nhwc,
                             atol=3e-2, rtol=3e-2)), \
        float(jnp.max(jnp.abs(out_nhwc.astype(jnp.float32) - ref_nhwc)))

    print("KERNEL_OK")
</pallas_src>

<mosaic_0001>
module attributes {stable_mosaic.version = 11 : i64} {
  func.func @_down_double_style_kernel(%arg0: i32, %arg1: i32, %arg2: memref<1x12x10x4xf32, #tpu.memory_space<vmem>>, %arg3: memref<1x4x8xf32, #tpu.memory_space<vmem>>, %arg4: memref<3x3x4x8xf32, #tpu.memory_space<vmem>>, %arg5: memref<1x8x8xf32, #tpu.memory_space<vmem>>, %arg6: memref<3x3x8x8xf32, #tpu.memory_space<vmem>>, %arg7: memref<4x8xf32, #tpu.memory_space<vmem>>, %arg8: memref<1x8xf32, #tpu.memory_space<vmem>>, %arg9: memref<1x4x8x8xf32, #tpu.memory_space<vmem>>, %arg10: memref<6x17x8xf32, #tpu.memory_space<vmem>>) attributes {dimension_semantics = [#tpu.dimension_semantics<parallel>, #tpu.dimension_semantics<parallel>], iteration_bounds = array<i64: 2, 2>, scalar_prefetch = 0 : i64, scratch_operands = 1 : i64, tpu.core_type = #tpu.core_type<tc>, window_params = [{transform_indices = @transform_0, window_bounds = array<i64: 1, 12, 10, 4>}, {transform_indices = @transform_1, window_bounds = array<i64: 1, 4, 8>}, {pipeline_mode = #tpu.pipeline_mode<synchronous>, transform_indices = @transform_2, window_bounds = array<i64: 3, 3, 4, 8>}, {transform_indices = @transform_3, window_bounds = array<i64: 1, 8, 8>}, {pipeline_mode = #tpu.pipeline_mode<synchronous>, transform_indices = @transform_4, window_bounds = array<i64: 3, 3, 8, 8>}, {pipeline_mode = #tpu.pipeline_mode<synchronous>, transform_indices = @transform_5, window_bounds = array<i64: 4, 8>}, {pipeline_mode = #tpu.pipeline_mode<synchronous>, transform_indices = @transform_6, window_bounds = array<i64: 1, 8>}, {transform_indices = @transform_7, window_bounds = array<i64: 1, 4, 8, 8>}]} {
    %c4_i32 = arith.constant 4 : i32
    %0 = arith.muli %arg1, %c4_i32 : i32
    %1 = tpu.assume_multiple %0, 4 : i32
    %c0 = arith.constant 0 : index
    %c0_0 = arith.constant 0 : index
    %c0_1 = arith.constant 0 : index
    %c0_2 = arith.constant 0 : index
    %2 = vector.load %arg4[%c0, %c0_0, %c0_1, %c0_2] : memref<3x3x4x8xf32, #tpu.memory_space<vmem>>, vector<3x3x4x8xf32>
    %c0_3 = arith.constant 0 : index
    %c0_4 = arith.constant 0 : index
    %c0_5 = arith.constant 0 : index
    %3 = vector.load %arg3[%c0_3, %c0_4, %c0_5] : memref<1x4x8xf32, #tpu.memory_space<vmem>>, vector<1x4x8xf32>
    %4 = vector.shape_cast %3 : vector<1x4x8xf32> to vector<4x8xf32>
    %5 = vector.shape_cast %4 : vector<4x8xf32> to vector<1x1x4x8xf32>
    %6 = vector.broadcast %5 : vector<1x1x4x8xf32> to vector<3x3x4x8xf32>
    %7 = arith.mulf %2, %6 : vector<3x3x4x8xf32>
    %c0_6 = arith.constant 0 : index
    %c0_7 = arith.constant 0 : index
    %c0_8 = arith.constant 0 : index
    %c0_9 = arith.constant 0 : index
    %8 = vector.load %arg6[%c0_6, %c0_7, %c0_8, %c0_9] : memref<3x3x8x8xf32, #tpu.memory_space<vmem>>, vector<3x3x8x8xf32>
    %c0_10 = arith.constant 0 : index
    %c0_11 = arith.constant 0 : index
    %c0_12 = arith.constant 0 : index
    %9 = vector.load %arg5[%c0_10, %c0_11, %c0_12] : memref<1x8x8xf32, #tpu.memory_space<vmem>>, vector<1x8x8xf32>
    %10 = vector.shape_cast %9 : vector<1x8x8xf32> to vector<8x8xf32>
    %11 = vector.shape_cast %10 : vector<8x8xf32> to vector<1x1x8x8xf32>
    %12 = vector.broadcast %11 : vector<1x1x8x8xf32> to vector<3x3x8x8xf32>
    %13 = arith.mulf %8, %12 : vector<3x3x8x8xf32>
    %c0_13 = arith.constant 0 : index
    %14 = arith.index_cast %1 : i32 to index
    %c0_14 = arith.constant 0 : index
    %c0_15 = arith.constant 0 : index
    %15 = vector.load %arg2[%c0_13, %14, %c0_14, %c0_15] : memref<1x12x10x4xf32, #tpu.memory_space<vmem>>, vector<1x8x10x4xf32>
    %16 = vector.shape_cast %15 : vector<1x8x10x4xf32> to vector<8x10x4xf32>
    %cst = arith.constant 0.000000e+00 : f32
    %17 = vector.broadcast %cst : f32 to vector<48x8xf32>
    %18 = vector.extract_strided_slice %16 {offsets = [0, 0, 0], sizes = [8, 8, 4], strides = [1, 1, 1]} : vector<8x10x4xf32> to vector<8x8x4xf32>
    %19 = vector.extract_strided_slice %18 {offsets = [0, 0, 0], sizes = [6, 8, 4], strides = [1, 1, 1]} : vector<8x8x4xf32> to vector<6x8x4xf32>
    %20 = vector.shape_cast %19 : vector<6x8x4xf32> to vector<48x4xf32>
    %21 = vector.extract_strided_slice %7 {offsets = [0, 0, 0, 0], sizes = [1, 1, 4, 8], strides = [1, 1, 1, 1]} : vector<3x3x4x8xf32> to vector<1x1x4x8xf32>
    %22 = vector.shape_cast %21 : vector<1x1x4x8xf32> to vector<4x8xf32>
    %cst_16 = arith.constant dense<0.000000e+00> : vector<48x8xf32>
    %23 = tpu.matmul %20, %22, %cst_16 {dimension_numbers = #tpu.dot_dimension_numbers<[1], [0], [0], [1], [0, 0, 1, 1], [], []>} : vector<48x4xf32>, vector<4x8xf32>, vector<48x8xf32> -> vector<48x8xf32>
    %24 = arith.addf %17, %23 : vector<48x8xf32>
    %25 = vector.extract_strided_slice %18 {offsets = [1, 0, 0], sizes = [6, 8, 4], strides = [1, 1, 1]} : vector<8x8x4xf32> to vector<6x8x4xf32>
    %26 = vector.shape_cast %25 : vector<6x8x4xf32> to vector<48x4xf32>
    %27 = vector.extract_strided_slice %7 {offsets = [1, 0, 0, 0], sizes = [1, 1, 4, 8], strides = [1, 1, 1, 1]} : vector<3x3x4x8xf32> to vector<1x1x4x8xf32>
    %28 = vector.shape_cast %27 : vector<1x1x4x8xf32> to vector<4x8xf32>
    %cst_17 = arith.constant dense<0.000000e+00> : vector<48x8xf32>
    %29 = tpu.matmul %26, %28, %cst_17 {dimension_numbers = #tpu.dot_dimension_numbers<[1], [0], [0], [1], [0, 0, 1, 1], [], []>} : vector<48x4xf32>, vector<4x8xf32>, vector<48x8xf32> -> vector<48x8xf32>
    %30 = arith.addf %24, %29 : vector<48x8xf32>
    %31 = vector.extract_strided_slice %18 {offsets = [2, 0, 0], sizes = [6, 8, 4], strides = [1, 1, 1]} : vector<8x8x4xf32> to vector<6x8x4xf32>
    %32 = vector.shape_cast %31 : vector<6x8x4xf32> to vector<48x4xf32>
    %33 = vector.extract_strided_slice %7 {offsets = [2, 0, 0, 0], sizes = [1, 1, 4, 8], strides = [1, 1, 1, 1]} : vector<3x3x4x8xf32> to vector<1x1x4x8xf32>
    %34 = vector.shape_cast %33 : vector<1x1x4x8xf32> to vector<4x8xf32>
    %cst_18 = arith.constant dense<0.000000e+00> : vector<48x8xf32>
    %35 = tpu.matmul %32, %34, %cst_18 {dimension_numbers = #tpu.dot_dimension_numbers<[1], [0], [0], [1], [0, 0, 1, 1], [], []>} : vector<48x4xf32>, vector<4x8xf32>, vector<48x8xf32> -> vector<48x8xf32>
    %36 = arith.addf %30, %35 : vector<48x8xf32>
    %37 = vector.extract_strided_slice %16 {offsets = [0, 1, 0], sizes = [8, 8, 4], strides = [1, 1, 1]} : vector<8x10x4xf32> to vector<8x8x4xf32>
    %38 = vector.extract_strided_slice %37 {offsets = [0, 0, 0], sizes = [6, 8, 4], strides = [1, 1, 1]} : vector<8x8x4xf32> to vector<6x8x4xf32>
    %39 = vector.shape_cast %38 : vector<6x8x4xf32> to vector<48x4xf32>
    %40 = vector.extract_strided_slice %7 {offsets = [0, 1, 0, 0], sizes = [1, 1, 4, 8], strides = [1, 1, 1, 1]} : vector<3x3x4x8xf32> to vector<1x1x4x8xf32>
    %41 = vector.shape_cast %40 : vector<1x1x4x8xf32> to vector<4x8xf32>
    %cst_19 = arith.constant dense<0.000000e+00> : vector<48x8xf32>
    %42 = tpu.matmul %39, %41, %cst_19 {dimension_numbers = #tpu.dot_dimension_numbers<[1], [0], [0], [1], [0, 0, 1, 1], [], []>} : vector<48x4xf32>, vector<4x8xf32>, vector<48x8xf32> -> vector<48x8xf32>
    %43 = arith.addf %36, %42 : vector<48x8xf32>
    %44 = vector.extract_strided_slice %37 {offsets = [1, 0, 0], sizes = [6, 8, 4], strides = [1, 1, 1]} : vector<8x8x4xf32> to vector<6x8x4xf32>
    %45 = vector.shape_cast %44 : vector<6x8x4xf32> to vector<48x4xf32>
    %46 = vector.extract_strided_slice %7 {offsets = [1, 1, 0, 0], sizes = [1, 1, 4, 8], strides = [1, 1, 1, 1]} : vector<3x3x4x8xf32> to vector<1x1x4x8xf32>
    %47 = vector.shape_cast %46 : vector<1x1x4x8xf32> to vector<4x8xf32>
    %cst_20 = arith.constant dense<0.000000e+00> : vector<48x8xf32>
    %48 = tpu.matmul %45, %47, %cst_20 {dimension_numbers = #tpu.dot_dimension_numbers<[1], [0], [0], [1], [0, 0, 1, 1], [], []>} : vector<48x4xf32>, vector<4x8xf32>, vector<48x8xf32> -> vector<48x8xf32>
    %49 = arith.addf %43, %48 : vector<48x8xf32>
    %50 = vector.extract_strided_slice %37 {offsets = [2, 0, 0], sizes = [6, 8, 4], strides = [1, 1, 1]} : vector<8x8x4xf32> to vector<6x8x4xf32>
    %51 = vector.shape_cast %50 : vector<6x8x4xf32> to vector<48x4xf32>
    %52 = vector.extract_strided_slice %7 {offsets = [2, 1, 0, 0], sizes = [1, 1, 4, 8], strides = [1, 1, 1, 1]} : vector<3x3x4x8xf32> to vector<1x1x4x8xf32>
    %53 = vector.shape_cast %52 : vector<1x1x4x8xf32> to vector<4x8xf32>
    %cst_21 = arith.constant dense<0.000000e+00> : vector<48x8xf32>
    %54 = tpu.matmul %51, %53, %cst_21 {dimension_numbers = #tpu.dot_dimension_numbers<[1], [0], [0], [1], [0, 0, 1, 1], [], []>} : vector<48x4xf32>, vector<4x8xf32>, vector<48x8xf32> -> vector<48x8xf32>
    %55 = arith.addf %49, %54 : vector<48x8xf32>
    %56 = vector.extract_strided_slice %16 {offsets = [0, 2, 0], sizes = [8, 8, 4], strides = [1, 1, 1]} : vector<8x10x4xf32> to vector<8x8x4xf32>
    %57 = vector.extract_strided_slice %56 {offsets = [0, 0, 0], sizes = [6, 8, 4], strides = [1, 1, 1]} : vector<8x8x4xf32> to vector<6x8x4xf32>
    %58 = vector.shape_cast %57 : vector<6x8x4xf32> to vector<48x4xf32>
    %59 = vector.extract_strided_slice %7 {offsets = [0, 2, 0, 0], sizes = [1, 1, 4, 8], strides = [1, 1, 1, 1]} : vector<3x3x4x8xf32> to vector<1x1x4x8xf32>
    %60 = vector.shape_cast %59 : vector<1x1x4x8xf32> to vector<4x8xf32>
    %cst_22 = arith.constant dense<0.000000e+00> : vector<48x8xf32>
    %61 = tpu.matmul %58, %60, %cst_22 {dimension_numbers = #tpu.dot_dimension_numbers<[1], [0], [0], [1], [0, 0, 1, 1], [], []>} : vector<48x4xf32>, vector<4x8xf32>, vector<48x8xf32> -> vector<48x8xf32>
    %62 = arith.addf %55, %61 : vector<48x8xf32>
    %63 = vector.extract_strided_slice %56 {offsets = [1, 0, 0], sizes = [6, 8, 4], strides = [1, 1, 1]} : vector<8x8x4xf32> to vector<6x8x4xf32>
    %64 = vector.shape_cast %63 : vector<6x8x4xf32> to vector<48x4xf32>
    %65 = vector.extract_strided_slice %7 {offsets = [1, 2, 0, 0], sizes = [1, 1, 4, 8], strides = [1, 1, 1, 1]} : vector<3x3x4x8xf32> to vector<1x1x4x8xf32>
    %66 = vector.shape_cast %65 : vector<1x1x4x8xf32> to vector<4x8xf32>
    %cst_23 = arith.constant dense<0.000000e+00> : vector<48x8xf32>
    %67 = tpu.matmul %64, %66, %cst_23 {dimension_numbers = #tpu.dot_dimension_numbers<[1], [0], [0], [1], [0, 0, 1, 1], [], []>} : vector<48x4xf32>, vector<4x8xf32>, vector<48x8xf32> -> vector<48x8xf32>
    %68 = arith.addf %62, %67 : vector<48x8xf32>
    %69 = vector.extract_strided_slice %56 {offsets = [2, 0, 0], sizes = [6, 8, 4], strides = [1, 1, 1]} : vector<8x8x4xf32> to vector<6x8x4xf32>
    %70 = vector.shape_cast %69 : vector<6x8x4xf32> to vector<48x4xf32>
    %71 = vector.extract_strided_slice %7 {offsets = [2, 2, 0, 0], sizes = [1, 1, 4, 8], strides = [1, 1, 1, 1]} : vector<3x3x4x8xf32> to vector<1x1x4x8xf32>
    %72 = vector.shape_cast %71 : vector<1x1x4x8xf32> to vector<4x8xf32>
    %cst_24 = arith.constant dense<0.000000e+00> : vector<48x8xf32>
    %73 = tpu.matmul %70, %72, %cst_24 {dimension_numbers = #tpu.dot_dimension_numbers<[1], [0], [0], [1], [0, 0, 1, 1], [], []>} : vector<48x4xf32>, vector<4x8xf32>, vector<48x8xf32> -> vector<48x8xf32>
    %74 = arith.addf %68, %73 : vector<48x8xf32>
    %75 = vector.shape_cast %74 : vector<48x8xf32> to vector<6x8x8xf32>
    %cst_25 = arith.constant 2.000000e+01 : f32
    %76 = vector.broadcast %cst_25 : f32 to vector<6x8x8xf32>
    %77 = arith.minimumf %75, %76 : vector<6x8x8xf32>
    %78 = math.exp %77 : vector<6x8x8xf32>
    %cst_26 = arith.constant 1.000000e+00 : f32
    %79 = vector.broadcast %cst_26 : f32 to vector<6x8x8xf32>
    %80 = arith.addf %79, %78 : vector<6x8x8xf32>
    %cst_27 = arith.constant 1.000000e+00 : f32
    %81 = vector.broadcast %cst_27 : f32 to vector<6x8x8xf32>
    %82 = arith.addf %81, %78 : vector<6x8x8xf32>
    %83 = arith.mulf %80, %82 : vector<6x8x8xf32>
    %cst_28 = arith.constant 1.000000e+00 : f32
    %84 = vector.broadcast %cst_28 : f32 to vector<6x8x8xf32>
    %85 = arith.subf %83, %84 : vector<6x8x8xf32>
    %86 = arith.mulf %75, %85 : vector<6x8x8xf32>
    %cst_29 = arith.constant 1.000000e+00 : f32
    %87 = vector.broadcast %cst_29 : f32 to vector<6x8x8xf32>
    %88 = arith.addf %83, %87 : vector<6x8x8xf32>
    %89 = arith.divf %86, %88 : vector<6x8x8xf32>
    %cst_30 = arith.constant 2.000000e+01 : f32
    %90 = vector.broadcast %cst_30 : f32 to vector<6x8x8xf32>
    %91 = arith.cmpf ogt, %75, %90 : vector<6x8x8xf32>
    %92 = arith.select %91, %75, %89 : vector<6x8x8xi1>, vector<6x8x8xf32>
    %cst_31 = arith.constant 0.000000e+00 : f32
    %93 = vector.broadcast %cst_31 : f32 to vector<6x1x8xf32>
    %c0_32 = arith.constant 0 : index
    %c7 = arith.constant 7 : index
    %c0_33 = arith.constant 0 : index
    %94 = vector.load %arg10[%c0_32, %c7, %c0_33] : memref<6x17x8xf32, #tpu.memory_space<vmem>>, vector<6x1x8xf32>
    tpu.vector_store %arg10[%c0_32, %c7, %c0_33], %93 {strides = array<i32>} : memref<6x17x8xf32, #tpu.memory_space<vmem>>, vector<6x1x8xf32>,
    %cst_34 = arith.constant 0.000000e+00 : f32
    %95 = vector.broadcast %cst_34 : f32 to vector<6x1x8xf32>
    %c0_35 = arith.constant 0 : index
    %c16 = arith.constant 16 : index
    %c0_36 = arith.constant 0 : index
    %96 = vector.load %arg10[%c0_35, %c16, %c0_36] : memref<6x17x8xf32, #tpu.memory_space<vmem>>, vector<6x1x8xf32>
    tpu.vector_store %arg10[%c0_35, %c16, %c0_36], %95 {strides = array<i32>} : memref<6x17x8xf32, #tpu.memory_space<vmem>>, vector<6x1x8xf32>,
    %c0_37 = arith.constant 0 : index
    %c8 = arith.constant 8 : index
    %c0_38 = arith.constant 0 : index
    %97 = vector.load %arg10[%c0_37, %c8, %c0_38] : memref<6x17x8xf32, #tpu.memory_space<vmem>>, vector<6x8x8xf32>
    tpu.vector_store %arg10[%c0_37, %c8, %c0_38], %92 {strides = array<i32>} : memref<6x17x8xf32, #tpu.memory_space<vmem>>, vector<6x8x8xf32>,
    %c0_i32 = arith.constant 0 : i32
    %98 = arith.cmpi eq, %arg1, %c0_i32 : i32
    %99 = arith.extui %98 : i1 to i32
    %c0_i32_39 = arith.constant 0 : i32
    %100 = arith.cmpi ne, %99, %c0_i32_39 : i32
    scf.if %100 {
      %cst_75 = arith.constant 0.000000e+00 : f32
      %210 = vector.broadcast %cst_75 : f32 to vector<1x10x8xf32>
      %c0_76 = arith.constant 0 : index
      %c7_77 = arith.constant 7 : index
      %c0_78 = arith.constant 0 : index
      %211 = vector.load %arg10[%c0_76, %c7_77, %c0_78] : memref<6x17x8xf32, #tpu.memory_space<vmem>>, vector<1x10x8xf32>
      tpu.vector_store %arg10[%c0_76, %c7_77, %c0_78], %210 {strides = array<i32>} : memref<6x17x8xf32, #tpu.memory_space<vmem>>, vector<1x10x8xf32>,
    } else {
    }
    %c1_i32 = arith.constant 1 : i32
    %101 = arith.cmpi eq, %arg1, %c1_i32 : i32
    %102 = arith.extui %101 : i1 to i32
    %c0_i32_40 = arith.constant 0 : i32
    %103 = arith.cmpi ne, %102, %c0_i32_40 : i32
    scf.if %103 {
      %cst_75 = arith.constant 0.000000e+00 : f32
      %210 = vector.broadcast %cst_75 : f32 to vector<1x10x8xf32>
      %c5 = arith.constant 5 : index
      %c7_76 = arith.constant 7 : index
      %c0_77 = arith.constant 0 : index
      %211 = vector.load %arg10[%c5, %c7_76, %c0_77] : memref<6x17x8xf32, #tpu.memory_space<vmem>>, vector<1x10x8xf32>
      tpu.vector_store %arg10[%c5, %c7_76, %c0_77], %210 {strides = array<i32>} : memref<6x17x8xf32, #tpu.memory_space<vmem>>, vector<1x10x8xf32>,
    } else {
    }
    %c0_41 = arith.constant 0 : index
    %c7_42 = arith.constant 7 : index
    %c0_43 = arith.constant 0 : index
    %104 = vector.load %arg10[%c0_41, %c7_42, %c0_43] : memref<6x17x8xf32, #tpu.memory_space<vmem>>, vector<6x10x8xf32>
    %cst_44 = arith.constant 0.000000e+00 : f32
    %105 = vector.broadcast %cst_44 : f32 to vector<32x8xf32>
    %106 = vector.extract_strided_slice %104 {offsets = [0, 0, 0], sizes = [6, 8, 8], strides = [1, 1, 1]} : vector<6x10x8xf32> to vector<6x8x8xf32>
    %107 = vector.extract_strided_slice %106 {offsets = [0, 0, 0], sizes = [4, 8, 8], strides = [1, 1, 1]} : vector<6x8x8xf32> to vector<4x8x8xf32>
    %108 = vector.shape_cast %107 : vector<4x8x8xf32> to vector<32x8xf32>
    %109 = vector.extract_strided_slice %13 {offsets = [0, 0, 0, 0], sizes = [1, 1, 8, 8], strides = [1, 1, 1, 1]} : vector<3x3x8x8xf32> to vector<1x1x8x8xf32>
    %110 = vector.shape_cast %109 : vector<1x1x8x8xf32> to vector<8x8xf32>
    %cst_45 = arith.constant dense<0.000000e+00> : vector<32x8xf32>
    %111 = tpu.matmul %108, %110, %cst_45 {dimension_numbers = #tpu.dot_dimension_numbers<[1], [0], [0], [1], [0, 0, 1, 1], [], []>} : vector<32x8xf32>, vector<8x8xf32>, vector<32x8xf32> -> vector<32x8xf32>
    %112 = arith.addf %105, %111 : vector<32x8xf32>
    %113 = vector.extract_strided_slice %106 {offsets = [1, 0, 0], sizes = [4, 8, 8], strides = [1, 1, 1]} : vector<6x8x8xf32> to vector<4x8x8xf32>
    %114 = vector.shape_cast %113 : vector<4x8x8xf32> to vector<32x8xf32>
    %115 = vector.extract_strided_slice %13 {offsets = [1, 0, 0, 0], sizes = [1, 1, 8, 8], strides = [1, 1, 1, 1]} : vector<3x3x8x8xf32> to vector<1x1x8x8xf32>
    %116 = vector.shape_cast %115 : vector<1x1x8x8xf32> to vector<8x8xf32>
    %cst_46 = arith.constant dense<0.000000e+00> : vector<32x8xf32>
    %117 = tpu.matmul %114, %116, %cst_46 {dimension_numbers = #tpu.dot_dimension_numbers<[1], [0], [0], [1], [0, 0, 1, 1], [], []>} : vector<32x8xf32>, vector<8x8xf32>, vector<32x8xf32> -> vector<32x8xf32>
    %118 = arith.addf %112, %117 : vector<32x8xf32>
    %119 = vector.extract_strided_slice %106 {offsets = [2, 0, 0], sizes = [4, 8, 8], strides = [1, 1, 1]} : vector<6x8x8xf32> to vector<4x8x8xf32>
    %120 = vector.shape_cast %119 : vector<4x8x8xf32> to vector<32x8xf32>
    %121 = vector.extract_strided_slice %13 {offsets = [2, 0, 0, 0], sizes = [1, 1, 8, 8], strides = [1, 1, 1, 1]} : vector<3x3x8x8xf32> to vector<1x1x8x8xf32>
    %122 = vector.shape_cast %121 : vector<1x1x8x8xf32> to vector<8x8xf32>
    %cst_47 = arith.constant dense<0.000000e+00> : vector<32x8xf32>
    %123 = tpu.matmul %120, %122, %cst_47 {dimension_numbers = #tpu.dot_dimension_numbers<[1], [0], [0], [1], [0, 0, 1, 1], [], []>} : vector<32x8xf32>, vector<8x8xf32>, vector<32x8xf32> -> vector<32x8xf32>
    %124 = arith.addf %118, %123 : vector<32x8xf32>
    %125 = vector.extract_strided_slice %104 {offsets = [0, 1, 0], sizes = [6, 8, 8], strides = [1, 1, 1]} : vector<6x10x8xf32> to vector<6x8x8xf32>
    %126 = vector.extract_strided_slice %125 {offsets = [0, 0, 0], sizes = [4, 8, 8], strides = [1, 1, 1]} : vector<6x8x8xf32> to vector<4x8x8xf32>
    %127 = vector.shape_cast %126 : vector<4x8x8xf32> to vector<32x8xf32>
    %128 = vector.extract_strided_slice %13 {offsets = [0, 1, 0, 0], sizes = [1, 1, 8, 8], strides = [1, 1, 1, 1]} : vector<3x3x8x8xf32> to vector<1x1x8x8xf32>
    %129 = vector.shape_cast %128 : vector<1x1x8x8xf32> to vector<8x8xf32>
    %cst_48 = arith.constant dense<0.000000e+00> : vector<32x8xf32>
    %130 = tpu.matmul %127, %129, %cst_48 {dimension_numbers = #tpu.dot_dimension_numbers<[1], [0], [0], [1], [0, 0, 1, 1], [], []>} : vector<32x8xf32>, vector<8x8xf32>, vector<32x8xf32> -> vector<32x8xf32>
    %131 = arith.addf %124, %130 : vector<32x8xf32>
    %132 = vector.extract_strided_slice %125 {offsets = [1, 0, 0], sizes = [4, 8, 8], strides = [1, 1, 1]} : vector<6x8x8xf32> to vector<4x8x8xf32>
    %133 = vector.shape_cast %132 : vector<4x8x8xf32> to vector<32x8xf32>
    %134 = vector.extract_strided_slice %13 {offsets = [1, 1, 0, 0], sizes = [1, 1, 8, 8], strides = [1, 1, 1, 1]} : vector<3x3x8x8xf32> to vector<1x1x8x8xf32>
    %135 = vector.shape_cast %134 : vector<1x1x8x8xf32> to vector<8x8xf32>
    %cst_49 = arith.constant dense<0.000000e+00> : vector<32x8xf32>
    %136 = tpu.matmul %133, %135, %cst_49 {dimension_numbers = #tpu.dot_dimension_numbers<[1], [0], [0], [1], [0, 0, 1, 1], [], []>} : vector<32x8xf32>, vector<8x8xf32>, vector<32x8xf32> -> vector<32x8xf32>
    %137 = arith.addf %131, %136 : vector<32x8xf32>
    %138 = vector.extract_strided_slice %125 {offsets = [2, 0, 0], sizes = [4, 8, 8], strides = [1, 1, 1]} : vector<6x8x8xf32> to vector<4x8x8xf32>
    %139 = vector.shape_cast %138 : vector<4x8x8xf32> to vector<32x8xf32>
    %140 = vector.extract_strided_slice %13 {offsets = [2, 1, 0, 0], sizes = [1, 1, 8, 8], strides = [1, 1, 1, 1]} : vector<3x3x8x8xf32> to vector<1x1x8x8xf32>
    %141 = vector.shape_cast %140 : vector<1x1x8x8xf32> to vector<8x8xf32>
    %cst_50 = arith.constant dense<0.000000e+00> : vector<32x8xf32>
    %142 = tpu.matmul %139, %141, %cst_50 {dimension_numbers = #tpu.dot_dimension_numbers<[1], [0], [0], [1], [0, 0, 1, 1], [], []>} : vector<32x8xf32>, vector<8x8xf32>, vector<32x8xf32> -> vector<32x8xf32>
    %143 = arith.addf %137, %142 : vector<32x8xf32>
    %144 = vector.extract_strided_slice %104 {offsets = [0, 2, 0], sizes = [6, 8, 8], strides = [1, 1, 1]} : vector<6x10x8xf32> to vector<6x8x8xf32>
    %145 = vector.extract_strided_slice %144 {offsets = [0, 0, 0], sizes = [4, 8, 8], strides = [1, 1, 1]} : vector<6x8x8xf32> to vector<4x8x8xf32>
    %146 = vector.shape_cast %145 : vector<4x8x8xf32> to vector<32x8xf32>
    %147 = vector.extract_strided_slice %13 {offsets = [0, 2, 0, 0], sizes = [1, 1, 8, 8], strides = [1, 1, 1, 1]} : vector<3x3x8x8xf32> to vector<1x1x8x8xf32>
    %148 = vector.shape_cast %147 : vector<1x1x8x8xf32> to vector<8x8xf32>
    %cst_51 = arith.constant dense<0.000000e+00> : vector<32x8xf32>
    %149 = tpu.matmul %146, %148, %cst_51 {dimension_numbers = #tpu.dot_dimension_numbers<[1], [0], [0], [1], [0, 0, 1, 1], [], []>} : vector<32x8xf32>, vector<8x8xf32>, vector<32x8xf32> -> vector<32x8xf32>
    %150 = arith.addf %143, %149 : vector<32x8xf32>
    %151 = vector.extract_strided_slice %144 {offsets = [1, 0, 0], sizes = [4, 8, 8], strides = [1, 1, 1]} : vector<6x8x8xf32> to vector<4x8x8xf32>
    %152 = vector.shape_cast %151 : vector<4x8x8xf32> to vector<32x8xf32>
    %153 = vector.extract_strided_slice %13 {offsets = [1, 2, 0, 0], sizes = [1, 1, 8, 8], strides = [1, 1, 1, 1]} : vector<3x3x8x8xf32> to vector<1x1x8x8xf32>
    %154 = vector.shape_cast %153 : vector<1x1x8x8xf32> to vector<8x8xf32>
    %cst_52 = arith.constant dense<0.000000e+00> : vector<32x8xf32>
    %155 = tpu.matmul %152, %154, %cst_52 {dimension_numbers = #tpu.dot_dimension_numbers<[1], [0], [0], [1], [0, 0, 1, 1], [], []>} : vector<32x8xf32>, vector<8x8xf32>, vector<32x8xf32> -> vector<32x8xf32>
    %156 = arith.addf %150, %155 : vector<32x8xf32>
    %157 = vector.extract_strided_slice %144 {offsets = [2, 0, 0], sizes = [4, 8, 8], strides = [1, 1, 1]} : vector<6x8x8xf32> to vector<4x8x8xf32>
    %158 = vector.shape_cast %157 : vector<4x8x8xf32> to vector<32x8xf32>
    %159 = vector.extract_strided_slice %13 {offsets = [2, 2, 0, 0], sizes = [1, 1, 8, 8], strides = [1, 1, 1, 1]} : vector<3x3x8x8xf32> to vector<1x1x8x8xf32>
    %160 = vector.shape_cast %159 : vector<1x1x8x8xf32> to vector<8x8xf32>
    %cst_53 = arith.constant dense<0.000000e+00> : vector<32x8xf32>
    %161 = tpu.matmul %158, %160, %cst_53 {dimension_numbers = #tpu.dot_dimension_numbers<[1], [0], [0], [1], [0, 0, 1, 1], [], []>} : vector<32x8xf32>, vector<8x8xf32>, vector<32x8xf32> -> vector<32x8xf32>
    %162 = arith.addf %156, %161 : vector<32x8xf32>
    %163 = vector.shape_cast %162 : vector<32x8xf32> to vector<4x8x8xf32>
    %cst_54 = arith.constant 2.000000e+01 : f32
    %164 = vector.broadcast %cst_54 : f32 to vector<4x8x8xf32>
    %165 = arith.minimumf %163, %164 : vector<4x8x8xf32>
    %166 = math.exp %165 : vector<4x8x8xf32>
    %cst_55 = arith.constant 1.000000e+00 : f32
    %167 = vector.broadcast %cst_55 : f32 to vector<4x8x8xf32>
    %168 = arith.addf %167, %166 : vector<4x8x8xf32>
    %cst_56 = arith.constant 1.000000e+00 : f32
    %169 = vector.broadcast %cst_56 : f32 to vector<4x8x8xf32>
    %170 = arith.addf %169, %166 : vector<4x8x8xf32>
    %171 = arith.mulf %168, %170 : vector<4x8x8xf32>
    %cst_57 = arith.constant 1.000000e+00 : f32
    %172 = vector.broadcast %cst_57 : f32 to vector<4x8x8xf32>
    %173 = arith.subf %171, %172 : vector<4x8x8xf32>
    %174 = arith.mulf %163, %173 : vector<4x8x8xf32>
    %cst_58 = arith.constant 1.000000e+00 : f32
    %175 = vector.broadcast %cst_58 : f32 to vector<4x8x8xf32>
    %176 = arith.addf %171, %175 : vector<4x8x8xf32>
    %177 = arith.divf %174, %176 : vector<4x8x8xf32>
    %cst_59 = arith.constant 2.000000e+01 : f32
    %178 = vector.broadcast %cst_59 : f32 to vector<4x8x8xf32>
    %179 = arith.cmpf ogt, %163, %178 : vector<4x8x8xf32>
    %180 = arith.select %179, %163, %177 : vector<4x8x8xi1>, vector<4x8x8xf32>
    %181 = vector.extract_strided_slice %16 {offsets = [2, 1, 0], sizes = [4, 8, 4], strides = [1, 1, 1]} : vector<8x10x4xf32> to vector<4x8x4xf32>
    %182 = vector.shape_cast %181 : vector<4x8x4xf32> to vector<32x4xf32>
    %c0_60 = arith.constant 0 : index
    %c0_61 = arith.constant 0 : index
    %183 = vector.load %arg7[%c0_60, %c0_61] : memref<4x8xf32, #tpu.memory_space<vmem>>, vector<4x8xf32>
    %cst_62 = arith.constant dense<0.000000e+00> : vector<32x8xf32>
    %184 = tpu.matmul %182, %183, %cst_62 {dimension_numbers = #tpu.dot_dimension_numbers<[1], [0], [0], [1], [0, 0, 1, 1], [], []>} : vector<32x4xf32>, vector<4x8xf32>, vector<32x8xf32> -> vector<32x8xf32>
    %c0_63 = arith.constant 0 : index
    %c0_64 = arith.constant 0 : index
    %185 = vector.load %arg8[%c0_63, %c0_64] : memref<1x8xf32, #tpu.memory_space<vmem>>, vector<1x8xf32>
    %186 = vector.broadcast %185 : vector<1x8xf32> to vector<32x8xf32>
    %187 = arith.addf %184, %186 : vector<32x8xf32>
    %cst_65 = arith.constant 2.000000e+01 : f32
    %188 = vector.broadcast %cst_65 : f32 to vector<32x8xf32>
    %189 = arith.minimumf %187, %188 : vector<32x8xf32>
    %190 = math.exp %189 : vector<32x8xf32>
    %cst_66 = arith.constant 1.000000e+00 : f32
    %191 = vector.broadcast %cst_66 : f32 to vector<32x8xf32>
    %192 = arith.addf %191, %190 : vector<32x8xf32>
    %cst_67 = arith.constant 1.000000e+00 : f32
    %193 = vector.broadcast %cst_67 : f32 to vector<32x8xf32>
    %194 = arith.addf %193, %190 : vector<32x8xf32>
    %195 = arith.mulf %192, %194 : vector<32x8xf32>
    %cst_68 = arith.constant 1.000000e+00 : f32
    %196 = vector.broadcast %cst_68 : f32 to vector<32x8xf32>
    %197 = arith.subf %195, %196 : vector<32x8xf32>
    %198 = arith.mulf %187, %197 : vector<32x8xf32>
    %cst_69 = arith.constant 1.000000e+00 : f32
    %199 = vector.broadcast %cst_69 : f32 to vector<32x8xf32>
    %200 = arith.addf %195, %199 : vector<32x8xf32>
    %201 = arith.divf %198, %200 : vector<32x8xf32>
    %cst_70 = arith.constant 2.000000e+01 : f32
    %202 = vector.broadcast %cst_70 : f32 to vector<32x8xf32>
    %203 = arith.cmpf ogt, %187, %202 : vector<32x8xf32>
    %204 = arith.select %203, %187, %201 : vector<32x8xi1>, vector<32x8xf32>
    %205 = vector.shape_cast %204 : vector<32x8xf32> to vector<4x8x8xf32>
    %206 = arith.addf %180, %205 : vector<4x8x8xf32>
    %c0_71 = arith.constant 0 : index
    %c0_72 = arith.constant 0 : index
    %c0_73 = arith.constant 0 : index
    %c0_74 = arith.constant 0 : index
    %207 = vector.load %arg9[%c0_71, %c0_72, %c0_73, %c0_74] : memref<1x4x8x8xf32, #tpu.memory_space<vmem>>, vector<1x4x8x8xf32>
    %208 = vector.shape_cast %207 : vector<1x4x8x8xf32> to vector<4x8x8xf32>
    %209 = vector.shape_cast %206 : vector<4x8x8xf32> to vector<1x4x8x8xf32>
    tpu.vector_store %arg9[%c0_71, %c0_72, %c0_73, %c0_74], %209 {strides = array<i32>} : memref<1x4x8x8xf32, #tpu.memory_space<vmem>>, vector<1x4x8x8xf32>,
    return
  }
  func.func @transform_0(%arg0: i32, %arg1: i32) -> (i32, i32, i32, i32) {
    %c0_i32 = arith.constant 0 : i32
    %c0_i32_0 = arith.constant 0 : i32
    %c0_i32_1 = arith.constant 0 : i32
    %c0_i32_2 = arith.constant 0 : i32
    return %arg0, %c0_i32, %c0_i32_0, %c0_i32_1 : i32, i32, i32, i32
  }
  func.func @transform_1(%arg0: i32, %arg1: i32) -> (i32, i32, i32) {
    %c0_i32 = arith.constant 0 : i32
    %c0_i32_0 = arith.constant 0 : i32
    %c0_i32_1 = arith.constant 0 : i32
    return %arg0, %c0_i32, %c0_i32_0 : i32, i32, i32
  }
  func.func @transform_2(%arg0: i32, %arg1: i32) -> (i32, i32, i32, i32) {
    %c0_i32 = arith.constant 0 : i32
    %c0_i32_0 = arith.constant 0 : i32
    %c0_i32_1 = arith.constant 0 : i32
    %c0_i32_2 = arith.constant 0 : i32
    %c0_i32_3 = arith.constant 0 : i32
    return %c0_i32, %c0_i32_0, %c0_i32_1, %c0_i32_2 : i32, i32, i32, i32
  }
  func.func @transform_3(%arg0: i32, %arg1: i32) -> (i32, i32, i32) {
    %c0_i32 = arith.constant 0 : i32
    %c0_i32_0 = arith.constant 0 : i32
    %c0_i32_1 = arith.constant 0 : i32
    return %arg0, %c0_i32, %c0_i32_0 : i32, i32, i32
  }
  func.func @transform_4(%arg0: i32, %arg1: i32) -> (i32, i32, i32, i32) {
    %c0_i32 = arith.constant 0 : i32
    %c0_i32_0 = arith.constant 0 : i32
    %c0_i32_1 = arith.constant 0 : i32
    %c0_i32_2 = arith.constant 0 : i32
    %c0_i32_3 = arith.constant 0 : i32
    return %c0_i32, %c0_i32_0, %c0_i32_1, %c0_i32_2 : i32, i32, i32, i32
  }
  func.func @transform_5(%arg0: i32, %arg1: i32) -> (i32, i32) {
    %c0_i32 = arith.constant 0 : i32
    %c0_i32_0 = arith.constant 0 : i32
    %c0_i32_1 = arith.constant 0 : i32
    return %c0_i32, %c0_i32_0 : i32, i32
  }
  func.func @transform_6(%arg0: i32, %arg1: i32) -> (i32, i32) {
    %c0_i32 = arith.constant 0 : i32
    %c0_i32_0 = arith.constant 0 : i32
    %c0_i32_1 = arith.constant 0 : i32
    return %c0_i32, %c0_i32_0 : i32, i32
  }
  func.func @transform_7(%arg0: i32, %arg1: i32) -> (i32, i32, i32, i32) {
    %c0_i32 = arith.constant 0 : i32
    %c0_i32_0 = arith.constant 0 : i32
    %c0_i32_1 = arith.constant 0 : i32
    return %arg0, %arg1, %c0_i32, %c0_i32_0 : i32, i32, i32, i32
  }
}

</mosaic_0001>

<llo_original>
// kernel: tpu_custom_call.1
$region0: #{tpu_custom_call.1}
  #allocation0 [shape = 'u32[]', space=smem, size = 0x4, offset = 0x4, fixed_abs, tag = 'smem constant byte address 0x4 - core index']
  #allocation1 [shape = 'u32[72,128]{1,0:T(1,128)}', space=vmem, size = 0x9000, scoped, tag = 'internal scratch']
  #allocation2 [shape = 'f32[6,17,8]{2,1,0:T(8,128)}', space=vmem, size = 0x12000, scoped, tag = 'scratch operand']
  %s0 = inlined_call_operand.vmem [shape: f32[2,12,10,4], index: 0, kind: input, shape index: {}]
  %s1 = inlined_call_operand.vmem [shape: f32[2,4,8], index: 1, kind: input, shape index: {}]
  %s2 = inlined_call_operand.vmem [shape: f32[3,3,4,8], index: 2, kind: input, shape index: {}]
  %s3 = inlined_call_operand.vmem [shape: f32[2,8,8], index: 3, kind: input, shape index: {}]
  %s4 = inlined_call_operand.vmem [shape: f32[3,3,8,8], index: 4, kind: input, shape index: {}]
  %s5 = inlined_call_operand.vmem [shape: f32[4,8], index: 5, kind: input, shape index: {}]
  %s6 = inlined_call_operand.vmem [shape: f32[1,8], index: 6, kind: input, shape index: {}]
  %s7 = inlined_call_operand.hbm [shape: f32[2,8,8,8], index: 7, kind: output, shape index: {}]
  %s8 = sld [smem:[#allocation0]]
  $region69: #{tpu_custom_call.1} parent=0
    _
  %s10 = ssub.s32 1, %s8
  %s11 = scalar_select 0, %s10, %s8
  $region1: #{tpu_custom_call.1} parent=0
    #allocation3 [shape = 'u8[32768]{0}', space=vmem, size = 0x8000, scoped, tag = 'output window, operand 0']
    #allocation4 [shape = 's32[2]{0}', space=sflag, size = 0x8, scoped, tag = 'scoped memory for tpu_custom_call.1']
    %12 = vsyncpa [#allocation4], 0
    %s13 = scalar_lea.sflag [#allocation4], 1
    %14 = vsyncpa %s13, 0
    loop: start=0, step=1, limit=6
    $region2: #{tpu_custom_call.1} parent=1 // loop_pre_header
      _
    $region3: #{tpu_custom_call.1} parent=1 // loop_header
      %s16 = sphi 0, %s20
      %p17 = scmp.ge.s32.totalorder %s16, 6
      %s23 = sphi 0, %s35
      %s24 = sphi 0, %s31
      %s25 = sphi 0, %s23
      %s26 = sphi 0, %s24
      %s27 = sphi 0, %s25
      %s28 = sphi 0, %s26
      %s38 = sphi 0, %s40
      %s41 = sphi 0, %s38
      %s42 = sphi 0, %s41
      %s58 = sphi 0, %s42
      %s64 = sphi 0, %s66
      %s67 = sphi 0, %s64
      %s68 = sphi 0, %s67
      %s84 = sphi 0, %s68
      %s88 = sphi 0, %s88
      %s90 = sphi 0, %s88
      %s91 = sphi 0, %s90
      %s105 = sphi 0, %s91
      %s111 = sphi 0, %s113
      %s114 = sphi 0, %s111
      %s115 = sphi 0, %s114
      %s131 = sphi 0, %s115
      %s135 = sphi 0, %s135
      %s137 = sphi 0, %s135
      %s138 = sphi 0, %s137
      %s152 = sphi 0, %s138
      %s156 = sphi 0, %s156
      %s158 = sphi 0, %s156
      %s159 = sphi 0, %s158
      %s173 = sphi 0, %s159
      %s177 = sphi 0, %s177
      %s179 = sphi 0, %s177
      %s180 = sphi 0, %s179
      %s194 = sphi 0, %s180
      %s202 = sphi 0, %s204
      %s205 = sphi 0, %s202
      %s206 = sphi 0, %s205
      %s222 = sphi 0, %s206
    $region4: #{tpu_custom_call.1} parent=1 // loop_header_branch
      %19 = sbr.rel (%p17) target = $region8
    $region5: #{tpu_custom_call.1} parent=1 // loop_body
      %s21 = ssub.s32 %s16, 1
      %s22 = ssub.s32 %s16, 2
      %s29 = sadd.s32 1, %s24
      %p30 = scmp.ge.s32.totalorder %s29, 2
      %s31 = scalar_select %p30, 0, %s29
      %s32 = sadd.s32 1, %s23
      %s33 = scalar_select %p30, %s32, %s23
      %p34 = scmp.ge.s32.totalorder %s33, 2
      %s35 = scalar_select %p34, 0, %s33
      %s36 = ssub.s32 %s23, %s35
      %p37 = scmp.eq.s32.totalorder %s36, 0
      %s39 = sadd.s32 %s38, 1
      %s40 = scalar_select %p37, %s38, %s39
      %p43 = pneg %p37
      %p44 = scmp.eq.s32.totalorder %s16, 3
      %p45 = por %p43, %p44
      %p46 = scmp.ne.s32.totalorder %s38, %s41
      %p47 = scmp.eq.s32.totalorder %s16, 0
      %p48 = por %p46, %p47
      %p49 = scmp.ne.s32.totalorder %s38, %s41
      %p50 = scmp.eq.s32.totalorder %s21, 3
      %p51 = por %p49, %p50
      %p52 = scmp.ne.s32.totalorder %s41, %s42
      %p53 = scmp.eq.s32.totalorder %s21, 0
      %p54 = por %p52, %p53
      %p55 = scmp.ne.s32.totalorder %s41, %s42
      %p56 = scmp.eq.s32.totalorder %s22, 3
      %p57 = por %p55, %p56
      %p59 = scmp.ne.s32.totalorder %s42, %s58
      %p60 = scmp.eq.s32.totalorder %s22, 0
      %p61 = por %p59, %p60
      %s62 = ssub.s32 %s23, %s35
      %p63 = scmp.eq.s32.totalorder %s62, 0
      %s65 = sadd.s32 %s64, 1
      %s66 = scalar_select %p63, %s64, %s65
      %p69 = pneg %p63
      %p70 = scmp.eq.s32.totalorder %s16, 3
      %p71 = por %p69, %p70
      %p72 = scmp.ne.s32.totalorder %s64, %s67
      %p73 = scmp.eq.s32.totalorder %s16, 0
      %p74 = por %p72, %p73
      %p75 = scmp.ne.s32.totalorder %s64, %s67
      %p76 = scmp.eq.s32.totalorder %s21, 3
      %p77 = por %p75, %p76
      %p78 = scmp.ne.s32.totalorder %s67, %s68
      %p79 = scmp.eq.s32.totalorder %s21, 0
      %p80 = por %p78, %p79
      %p81 = scmp.ne.s32.totalorder %s67, %s68
      %p82 = scmp.eq.s32.totalorder %s22, 3
      %p83 = por %p81, %p82
      %p85 = scmp.ne.s32.totalorder %s68, %s84
      %p86 = scmp.eq.s32.totalorder %s22, 0
      %p87 = por %p85, %p86
      %s89 = sadd.s32 %s88, 1
      %p92 = scmp.eq.s32.totalorder %s16, 3
      %p93 = scmp.ne.s32.totalorder %s88, %s90
      %p94 = scmp.eq.s32.totalorder %s16, 0
      %p95 = por %p93, %p94
      %p96 = scmp.ne.s32.totalorder %s88, %s90
      %p97 = scmp.eq.s32.totalorder %s21, 3
      %p98 = por %p96, %p97
      %p99 = scmp.ne.s32.totalorder %s90, %s91
      %p100 = scmp.eq.s32.totalorder %s21, 0
      %p101 = por %p99, %p100
      %p102 = scmp.ne.s32.totalorder %s90, %s91
      %p103 = scmp.eq.s32.totalorder %s22, 3
      %p104 = por %p102, %p103
      %p106 = scmp.ne.s32.totalorder %s91, %s105
      %p107 = scmp.eq.s32.totalorder %s22, 0
      %p108 = por %p106, %p107
      %s109 = ssub.s32 %s23, %s35
      %p110 = scmp.eq.s32.totalorder %s109, 0
      %s112 = sadd.s32 %s111, 1
      %s113 = scalar_select %p110, %s111, %s112
      %p116 = pneg %p110
      %p117 = scmp.eq.s32.totalorder %s16, 3
      %p118 = por %p116, %p117
      %p119 = scmp.ne.s32.totalorder %s111, %s114
      %p120 = scmp.eq.s32.totalorder %s16, 0
      %p121 = por %p119, %p120
      %p122 = scmp.ne.s32.totalorder %s111, %s114
      %p123 = scmp.eq.s32.totalorder %s21, 3
      %p124 = por %p122, %p123
      %p125 = scmp.ne.s32.totalorder %s114, %s115
      %p126 = scmp.eq.s32.totalorder %s21, 0
      %p127 = por %p125, %p126
      %p128 = scmp.ne.s32.totalorder %s114, %s115
      %p129 = scmp.eq.s32.totalorder %s22, 3
      %p130 = por %p128, %p129
      %p132 = scmp.ne.s32.totalorder %s115, %s131
      %p133 = scmp.eq.s32.totalorder %s22, 0
      %p134 = por %p132, %p133
      %s136 = sadd.s32 %s135, 1
      %p139 = scmp.eq.s32.totalorder %s16, 3
      %p140 = scmp.ne.s32.totalorder %s135, %s137
      %p141 = scmp.eq.s32.totalorder %s16, 0
      %p142 = por %p140, %p141
      %p143 = scmp.ne.s32.totalorder %s135, %s137
      %p144 = scmp.eq.s32.totalorder %s21, 3
      %p145 = por %p143, %p144
      %p146 = scmp.ne.s32.totalorder %s137, %s138
      %p147 = scmp.eq.s32.totalorder %s21, 0
      %p148 = por %p146, %p147
      %p149 = scmp.ne.s32.totalorder %s137, %s138
      %p150 = scmp.eq.s32.totalorder %s22, 3
      %p151 = por %p149, %p150
      %p153 = scmp.ne.s32.totalorder %s138, %s152
      %p154 = scmp.eq.s32.totalorder %s22, 0
      %p155 = por %p153, %p154
      %s157 = sadd.s32 %s156, 1
      %p160 = scmp.eq.s32.totalorder %s16, 3
      %p161 = scmp.ne.s32.totalorder %s156, %s158
      %p162 = scmp.eq.s32.totalorder %s16, 0
      %p163 = por %p161, %p162
      %p164 = scmp.ne.s32.totalorder %s156, %s158
      %p165 = scmp.eq.s32.totalorder %s21, 3
      %p166 = por %p164, %p165
      %p167 = scmp.ne.s32.totalorder %s158, %s159
      %p168 = scmp.eq.s32.totalorder %s21, 0
      %p169 = por %p167, %p168
      %p170 = scmp.ne.s32.totalorder %s158, %s159
      %p171 = scmp.eq.s32.totalorder %s22, 3
      %p172 = por %p170, %p171
      %p174 = scmp.ne.s32.totalorder %s159, %s173
      %p175 = scmp.eq.s32.totalorder %s22, 0
      %p176 = por %p174, %p175
      %s178 = sadd.s32 %s177, 1
      %p181 = scmp.eq.s32.totalorder %s16, 3
      %p182 = scmp.ne.s32.totalorder %s177, %s179
      %p183 = scmp.eq.s32.totalorder %s16, 0
      %p184 = por %p182, %p183
      %p185 = scmp.ne.s32.totalorder %s177, %s179
      %p186 = scmp.eq.s32.totalorder %s21, 3
      %p187 = por %p185, %p186
      %p188 = scmp.ne.s32.totalorder %s179, %s180
      %p189 = scmp.eq.s32.totalorder %s21, 0
      %p190 = por %p188, %p189
      %p191 = scmp.ne.s32.totalorder %s179, %s180
      %p192 = scmp.eq.s32.totalorder %s22, 3
      %p193 = por %p191, %p192
      %p195 = scmp.ne.s32.totalorder %s180, %s194
      %p196 = scmp.eq.s32.totalorder %s22, 0
      %p197 = por %p195, %p196
      %s198 = ssub.s32 %s23, %s35
      %s199 = ssub.s32 %s24, %s31
      %s200 = sor.u32 %s198, %s199
      %p201 = scmp.eq.s32.totalorder %s200, 0
      %s203 = sadd.s32 %s202, 1
      %s204 = scalar_select %p201, %s202, %s203
      %p207 = pneg %p201
      %p208 = scmp.eq.s32.totalorder %s16, 3
      %p209 = por %p207, %p208
      %p210 = scmp.ne.s32.totalorder %s202, %s205
      %p211 = scmp.eq.s32.totalorder %s16, 0
      %p212 = por %p210, %p211
      %p213 = scmp.ne.s32.totalorder %s202, %s205
      %p214 = scmp.eq.s32.totalorder %s21, 3
      %p215 = por %p213, %p214
      %p216 = scmp.ne.s32.totalorder %s205, %s206
      %p217 = scmp.eq.s32.totalorder %s21, 0
      %p218 = por %p216, %p217
      %p219 = scmp.ne.s32.totalorder %s205, %s206
      %p220 = scmp.eq.s32.totalorder %s22, 3
      %p221 = por %p219, %p220
      %p223 = scmp.ne.s32.totalorder %s206, %s222
      %p224 = scmp.eq.s32.totalorder %s22, 0
      %p225 = por %p223, %p224
      %p226 = scmp.le.s32.totalorder 1, %s16
      %p227 = scmp.lt.s32.totalorder %s16, 5
      %p228 = pnand %p226, %p227
      %p229 = pneg %p228
      // Predicated region
      $region9: #{tpu_custom_call.1} parent=5 // pred_check
        _
      $region10: #{tpu_custom_call.1} parent=5 // pred_check_branch
        %231 = sbr.rel (%p228) target = $region12
      $region11: #{tpu_custom_call.1} parent=5 // pred_region
        %s232 = ssub.s32 %s16, 1
        // Predicated region
        $region13: #{tpu_custom_call.1} parent=11 // pred_check
          %p233 = pneg %p101
        $region14: #{tpu_custom_call.1} parent=11 // pred_check_branch
          %235 = sbr.rel (%p233) target = $region16
        $region15: #{tpu_custom_call.1} parent=11 // pred_region
          _
        $region16: #{tpu_custom_call.1} parent=11 // pred_fallthru
          _
        // Predicated region
        $region17: #{tpu_custom_call.1} parent=11 // pred_check
          %p236 = pneg %p148
        $region18: #{tpu_custom_call.1} parent=11 // pred_check_branch
          %238 = sbr.rel (%p236) target = $region20
        $region19: #{tpu_custom_call.1} parent=11 // pred_region
          _
        $region20: #{tpu_custom_call.1} parent=11 // pred_fallthru
          _
        // Predicated region
        $region21: #{tpu_custom_call.1} parent=11 // pred_check
          %p239 = pneg %p169
        $region22: #{tpu_custom_call.1} parent=11 // pred_check_branch
          %241 = sbr.rel (%p239) target = $region24
        $region23: #{tpu_custom_call.1} parent=11 // pred_region
          _
        $region24: #{tpu_custom_call.1} parent=11 // pred_fallthru
          _
        // Predicated region
        $region25: #{tpu_custom_call.1} parent=11 // pred_check
          %p242 = pneg %p190
        $region26: #{tpu_custom_call.1} parent=11 // pred_check_branch
          %244 = sbr.rel (%p242) target = $region28
        $region27: #{tpu_custom_call.1} parent=11 // pred_region
          _
        $region28: #{tpu_custom_call.1} parent=11 // pred_fallthru
          _
      $region12: #{tpu_custom_call.1} parent=5 // pred_fallthru
        _
      %p245 = scmp.lt.s32.totalorder %s16, 4
      // Predicated region
      $region29: #{tpu_custom_call.1} parent=5 // pred_check
        %p246 = pneg %p245
      $region30: #{tpu_custom_call.1} parent=5 // pred_check_branch
        %248 = sbr.rel (%p246) target = $region32
      $region31: #{tpu_custom_call.1} parent=5 // pred_region
        // Predicated region
        $region33: #{tpu_custom_call.1} parent=31 // pred_check
          %p249 = pneg %p48
        $region34: #{tpu_custom_call.1} parent=31 // pred_check_branch
          %251 = sbr.rel (%p249) target = $region36
        $region35: #{tpu_custom_call.1} parent=31 // pred_region
          %p252 = scmp.lt.s32.totalorder %s23, 1
          %s253 = scalar_select %p252, %s23, 1
          %s254 = smul.addr %s253, 24
          %s255 = smul.addr %s254, 8
          %s256 = scalar_lea.vmem %s0, %s255
        $region36: #{tpu_custom_call.1} parent=31 // pred_fallthru
          _
        // Predicated region
        $region37: #{tpu_custom_call.1} parent=31 // pred_check
          %p257 = pneg %p74
        $region38: #{tpu_custom_call.1} parent=31 // pred_check_branch
          %259 = sbr.rel (%p257) target = $region40
        $region39: #{tpu_custom_call.1} parent=31 // pred_region
          %p260 = scmp.lt.s32.totalorder %s23, 1
          %s261 = scalar_select %p260, %s23, 1
          %s262 = smul.addr %s261, 4
          %s263 = scalar_lea.vmem %s1, %s262
        $region40: #{tpu_custom_call.1} parent=31 // pred_fallthru
          _
        // Predicated region
        $region41: #{tpu_custom_call.1} parent=31 // pred_check
          %p264 = pneg %p121
        $region42: #{tpu_custom_call.1} parent=31 // pred_check_branch
          %266 = sbr.rel (%p264) target = $region44
        $region43: #{tpu_custom_call.1} parent=31 // pred_region
          %p267 = scmp.lt.s32.totalorder %s23, 1
          %s268 = scalar_select %p267, %s23, 1
          %s269 = smul.addr %s268, 8
          %s270 = scalar_lea.vmem %s3, %s269
        $region44: #{tpu_custom_call.1} parent=31 // pred_fallthru
          _
      $region32: #{tpu_custom_call.1} parent=5 // pred_fallthru
        _
      %p271 = scmp.le.s32.totalorder 1, %s16
      %p272 = scmp.lt.s32.totalorder %s16, 5
      %p273 = pnand %p271, %p272
      %p274 = pneg %p273
      // Predicated region
      $region45: #{tpu_custom_call.1} parent=5 // pred_check
        _
      $region46: #{tpu_custom_call.1} parent=5 // pred_check_branch
        %276 = sbr.rel (%p273) target = $region48
      $region47: #{tpu_custom_call.1} parent=5 // pred_region
        %s277 = ssub.s32 %s16, 1
        %p278 = scmp.lt.s32.totalorder %s25, 1
        %s279 = scalar_select %p278, %s25, 1
        %s280 = smul.addr %s279, 24
        %s281 = smul.addr %s280, 8
        %s282 = scalar_lea.vmem %s0, %s281
        %p283 = pneg %p54
        %p284 = pneg %p51
        %p285 = scmp.lt.s32.totalorder %s25, 1
        %s286 = scalar_select %p285, %s25, 1
        %s287 = smul.addr %s286, 4
        %s288 = scalar_lea.vmem %s1, %s287
        %p289 = pneg %p80
        %p290 = pneg %p77
        %p291 = pneg %p101
        %p292 = pneg %p98
        %p293 = scmp.lt.s32.totalorder %s25, 1
        %s294 = scalar_select %p293, %s25, 1
        %s295 = smul.addr %s294, 8
        %s296 = scalar_lea.vmem %s3, %s295
        %p297 = pneg %p127
        %p298 = pneg %p124
        %p299 = pneg %p148
        %p300 = pneg %p145
        %p301 = pneg %p169
        %p302 = pneg %p166
        %p303 = pneg %p190
        %p304 = pneg %p187
        %p305 = pneg %p218
        %p306 = pneg %p215
        %s307 = sand.u32 %s205, 1
        %s308 = scalar_lea.sflag [#allocation4], %s307
        %s309 = sand.u32 %s205, 1
        %s310 = smul.addr %s309, 32
        %s311 = scalar_lea.vmem [#allocation3], %s310
        %p312 = scmp.lt.s32.totalorder %s25, 1
        %s313 = scalar_select %p312, %s25, 1
        %s314 = smul.addr %s313, 24
        %s315 = smul.addr %s314, 8
        %s316 = scalar_lea.vmem %s0, %s315
        %p317 = scmp.lt.s32.totalorder %s25, 1
        %s318 = scalar_select %p317, %s25, 1
        %s319 = smul.addr %s318, 4
        %s320 = scalar_lea.vmem %s1, %s319
        %p321 = scmp.lt.s32.totalorder %s25, 1
        %s322 = scalar_select %p321, %s25, 1
        %s323 = smul.addr %s322, 8
        %s324 = scalar_lea.vmem %s3, %s323
        %s325 = smul.u32 4, %s26
        %s326 = smul.u32 %s26, 4
        %v327 = vld [vmem:[%s2] sm:$0xf]
        %v328 = vld [vmem:[%s2 + $0x4] sm:$0xf]
        %v329 = vld [vmem:[%s2 + $0x8] sm:$0xf]
        %v330 = vld [vmem:[%s2 + $0xc] sm:$0xf]
        %v331 = vld [vmem:[%s2 + $0x10] sm:$0xf]
        %v332 = vld [vmem:[%s2 + $0x14] sm:$0xf]
        %v333 = vld [vmem:[%s2 + $0x18] sm:$0xf]
        %v334 = vld [vmem:[%s2 + $0x1c] sm:$0xf]
        %v335 = vld [vmem:[%s2 + $0x20] sm:$0xf]
        %v336 = vld [vmem:[%s320] sm:$0xf]
        %v337 = vmul.f32 %v327, %v336
        %v338 = vmul.f32 %v328, %v336
        %v339 = vmul.f32 %v329, %v336
        %v340 = vmul.f32 %v330, %v336
        %v341 = vmul.f32 %v331, %v336
        %v342 = vmul.f32 %v332, %v336
        %v343 = vmul.f32 %v333, %v336
        %v344 = vmul.f32 %v334, %v336
        %v345 = vmul.f32 %v335, %v336
        %v346 = vld [vmem:[%s4] sm:$0xff]
        %v347 = vld [vmem:[%s4 + $0x8] sm:$0xff]
        %v348 = vld [vmem:[%s4 + $0x10] sm:$0xff]
        %v349 = vld [vmem:[%s4 + $0x18] sm:$0xff]
        %v350 = vld [vmem:[%s4 + $0x20] sm:$0xff]
        %v351 = vld [vmem:[%s4 + $0x28] sm:$0xff]
        %v352 = vld [vmem:[%s4 + $0x30] sm:$0xff]
        %v353 = vld [vmem:[%s4 + $0x38] sm:$0xff]
        %v354 = vld [vmem:[%s4 + $0x40] sm:$0xff]
        %v355 = vld [vmem:[%s324] sm:$0xff]
        %v356 = vmul.f32 %v346, %v355
        %v357 = vmul.f32 %v347, %v355
        %v358 = vmul.f32 %v348, %v355
        %v359 = vmul.f32 %v349, %v355
        %v360 = vmul.f32 %v350, %v355
        %v361 = vmul.f32 %v351, %v355
        %v362 = vmul.f32 %v352, %v355
        %v363 = vmul.f32 %v353, %v355
        %v364 = vmul.f32 %v354, %v355
        %s365 = smul.u32 %s326, 16
        %s366 = scalar_lea.vmem %s316, %s365
        %v367 = vld [vmem:[%s366] sm:$0xff]
        %v368 = vld [vmem:[%s366 + $0x8] sm:$0x3]
        %v369 = vld [vmem:[%s366 + $0x10] sm:$0xff]
        %v370 = vld [vmem:[%s366 + $0x18] sm:$0x3]
        %v371 = vld [vmem:[%s366 + $0x20] sm:$0xff]
        %v372 = vld [vmem:[%s366 + $0x28] sm:$0x3]
        %v373 = vld [vmem:[%s366 + $0x30] sm:$0xff]
        %v374 = vld [vmem:[%s366 + $0x38] sm:$0x3]
        %v375 = vld [vmem:[%s366 + $0x40] sm:$0xff]
        %v376 = vld [vmem:[%s366 + $0x48] sm:$0x3]
        %v377 = vld [vmem:[%s366 + $0x50] sm:$0xff]
        %v378 = vld [vmem:[%s366 + $0x58] sm:$0x3]
        %v379 = vld [vmem:[%s366 + $0x60] sm:$0xff]
        %v380 = vld [vmem:[%s366 + $0x68] sm:$0x3]
        %v381 = vld [vmem:[%s366 + $0x70] sm:$0xff]
        %v382 = vld [vmem:[%s366 + $0x78] sm:$0x3]
        %vm383 = vcmask 31744
        %v385 = vsel %vm383, %v369, 0
        %v388 = vsel %vm383, %v371, 0
        %v391 = vsel %vm383, %v373, 0
        %v394 = vsel %vm383, %v375, 0
        %v397 = vsel %vm383, %v377, 0
        %v400 = vsel %vm383, %v379, 0
        %vm402 = vcmask 1043456
        %v404 = vsel %vm402, %v340, 0
        %406 = vmatpush.msra.mxu0 0.0
        %407 = vmatpush.msra.mxu0 0.0
        %408 = vmatpush.msra.mxu0 0.0
        %409 = vmatpush.msra.mxu0 0.0
        %410 = vmatpush.msra.mxu0 0.0
        %411 = vmatpush.msra.mxu0 0.0
        %412 = vmatpush.msra.mxu0 0.0
        %413 = vmatpush.msra.mxu0 0.0
        %414 = vmatpush.msra.mxu0 0.0
        %415 = vmatpush.msra.mxu0 0.0
        %416 = vmatpush.msra.mxu0 0.0
        %417 = vmatpush.msra.mxu0 0.0
        %418 = vmatpush.msra.mxu0 0.0
        %419 = vmatpush.msra.mxu0 0.0
        %420 = vmatpush.msra.mxu0 0.0
        %421 = vmatpush.msra.mxu0 %v404
        %422 = vmatmul.f32.gmra.mxu0 %v385
        %v423 = vpop.f32.mrf.mxu0
        %v424 = vadd.f32 0.0, %v423
        %425 = vmatmul.f32.gmra.mxu0 %v388
        %v426 = vpop.f32.mrf.mxu0
        %v427 = vadd.f32 0.0, %v426
        %428 = vmatmul.f32.gmra.mxu0 %v391
        %v429 = vpop.f32.mrf.mxu0
        %v430 = vadd.f32 0.0, %v429
        %431 = vmatmul.f32.gmra.mxu0 %v394
        %v432 = vpop.f32.mrf.mxu0
        %v433 = vadd.f32 0.0, %v432
        %434 = vmatmul.f32.gmra.mxu0 %v397
        %v435 = vpop.f32.mrf.mxu0
        %v436 = vadd.f32 0.0, %v435
        %437 = vmatmul.f32.gmra.mxu0 %v400
        %v438 = vpop.f32.mrf.mxu0
        %v439 = vadd.f32 0.0, %v438
        %440 = vdwg.mxu0
        %v442 = vsel %vm383, %v367, 0
        %v445 = vsel %vm402, %v337, 0
        %447 = vmatpush.msra.mxu0 0.0
        %448 = vmatpush.msra.mxu0 0.0
        %449 = vmatpush.msra.mxu0 0.0
        %450 = vmatpush.msra.mxu0 0.0
        %451 = vmatpush.msra.mxu0 0.0
        %452 = vmatpush.msra.mxu0 0.0
        %453 = vmatpush.msra.mxu0 0.0
        %454 = vmatpush.msra.mxu0 0.0
        %455 = vmatpush.msra.mxu0 0.0
        %456 = vmatpush.msra.mxu0 0.0
        %457 = vmatpush.msra.mxu0 0.0
        %458 = vmatpush.msra.mxu0 0.0
        %459 = vmatpush.msra.mxu0 0.0
        %460 = vmatpush.msra.mxu0 0.0
        %461 = vmatpush.msra.mxu0 0.0
        %462 = vmatpush.msra.mxu0 %v445
        %463 = vmatmul.f32.gmra.mxu0 %v442
        %v464 = vpop.f32.mrf.mxu0
        %v465 = vadd.f32 %v424, %v464
        %466 = vmatmul.f32.gmra.mxu0 %v385
        %v467 = vpop.f32.mrf.mxu0
        %v468 = vadd.f32 %v427, %v467
        %469 = vmatmul.f32.gmra.mxu0 %v388
        %v470 = vpop.f32.mrf.mxu0
        %v471 = vadd.f32 %v430, %v470
        %472 = vmatmul.f32.gmra.mxu0 %v391
        %v473 = vpop.f32.mrf.mxu0
        %v474 = vadd.f32 %v433, %v473
        %475 = vmatmul.f32.gmra.mxu0 %v394
        %v476 = vpop.f32.mrf.mxu0
        %v477 = vadd.f32 %v436, %v476
        %478 = vmatmul.f32.gmra.mxu0 %v397
        %v479 = vpop.f32.mrf.mxu0
        %v480 = vadd.f32 %v439, %v479
        %481 = vdwg.mxu0
        %v483 = vsel %vm383, %v381, 0
        %v486 = vsel %vm402, %v343, 0
        %488 = vmatpush.msra.mxu0 0.0
        %489 = vmatpush.msra.mxu0 0.0
        %490 = vmatpush.msra.mxu0 0.0
        %491 = vmatpush.msra.mxu0 0.0
        %492 = vmatpush.msra.mxu0 0.0
        %493 = vmatpush.msra.mxu0 0.0
        %494 = vmatpush.msra.mxu0 0.0
        %495 = vmatpush.msra.mxu0 0.0
        %496 = vmatpush.msra.mxu0 0.0
        %497 = vmatpush.msra.mxu0 0.0
        %498 = vmatpush.msra.mxu0 0.0
        %499 = vmatpush.msra.mxu0 0.0
        %500 = vmatpush.msra.mxu0 0.0
        %501 = vmatpush.msra.mxu0 0.0
        %502 = vmatpush.msra.mxu0 0.0
        %503 = vmatpush.msra.mxu0 %v486
        %504 = vmatmul.f32.gmra.mxu0 %v388
        %v505 = vpop.f32.mrf.mxu0
        %v506 = vadd.f32 0.0, %v505
        %507 = vmatmul.f32.gmra.mxu0 %v391
        %v508 = vpop.f32.mrf.mxu0
        %v509 = vadd.f32 0.0, %v508
        %510 = vmatmul.f32.gmra.mxu0 %v394
        %v511 = vpop.f32.mrf.mxu0
        %v512 = vadd.f32 0.0, %v511
        %513 = vmatmul.f32.gmra.mxu0 %v397
        %v514 = vpop.f32.mrf.mxu0
        %v515 = vadd.f32 0.0, %v514
        %516 = vmatmul.f32.gmra.mxu0 %v400
        %v517 = vpop.f32.mrf.mxu0
        %v518 = vadd.f32 0.0, %v517
        %519 = vmatmul.f32.gmra.mxu0 %v483
        %v520 = vpop.f32.mrf.mxu0
        %v521 = vadd.f32 0.0, %v520
        %522 = vdwg.mxu0
        %v523 = vadd.f32 %v465, %v506
        %v524 = vadd.f32 %v468, %v509
        %v525 = vadd.f32 %v471, %v512
        %v526 = vadd.f32 %v474, %v515
        %v527 = vadd.f32 %v477, %v518
        %v528 = vadd.f32 %v480, %v521
        %vm535 = vcmask 1046528
        %v536 = vrot.slane %v367, 1
        %v537 = vrot.slane %v368, 1
        %v538 = vsel %vm535, %v536, %v537
        %v539 = vrot.slane %v369, 1
        %v540 = vrot.slane %v370, 1
        %v541 = vsel %vm535, %v539, %v540
        %v542 = vrot.slane %v371, 1
        %v543 = vrot.slane %v372, 1
        %v544 = vsel %vm535, %v542, %v543
        %v545 = vrot.slane %v373, 1
        %v546 = vrot.slane %v374, 1
        %v547 = vsel %vm535, %v545, %v546
        %v548 = vrot.slane %v375, 1
        %v549 = vrot.slane %v376, 1
        %v550 = vsel %vm535, %v548, %v549
        %v551 = vrot.slane %v377, 1
        %v552 = vrot.slane %v378, 1
        %v553 = vsel %vm535, %v551, %v552
        %v554 = vsel %vm383, %v538, 0
        %v556 = vsel %vm383, %v541, 0
        %v558 = vsel %vm383, %v544, 0
        %v560 = vsel %vm383, %v547, 0
        %v562 = vsel %vm383, %v550, 0
        %v564 = vsel %vm383, %v553, 0
        %v567 = vsel %vm402, %v338, 0
        %569 = vmatpush.msra.mxu0 0.0
        %570 = vmatpush.msra.mxu0 0.0
        %571 = vmatpush.msra.mxu0 0.0
        %572 = vmatpush.msra.mxu0 0.0
        %573 = vmatpush.msra.mxu0 0.0
        %574 = vmatpush.msra.mxu0 0.0
        %575 = vmatpush.msra.mxu0 0.0
        %576 = vmatpush.msra.mxu0 0.0
        %577 = vmatpush.msra.mxu0 0.0
        %578 = vmatpush.msra.mxu0 0.0
        %579 = vmatpush.msra.mxu0 0.0
        %580 = vmatpush.msra.mxu0 0.0
        %581 = vmatpush.msra.mxu0 0.0
        %582 = vmatpush.msra.mxu0 0.0
        %583 = vmatpush.msra.mxu0 0.0
        %584 = vmatpush.msra.mxu0 %v567
        %585 = vmatmul.f32.gmra.mxu0 %v554
        %v586 = vpop.f32.mrf.mxu0
        %v587 = vadd.f32 0.0, %v586
        %588 = vmatmul.f32.gmra.mxu0 %v556
        %v589 = vpop.f32.mrf.mxu0
        %v590 = vadd.f32 0.0, %v589
        %591 = vmatmul.f32.gmra.mxu0 %v558
        %v592 = vpop.f32.mrf.mxu0
        %v593 = vadd.f32 0.0, %v592
        %594 = vmatmul.f32.gmra.mxu0 %v560
        %v595 = vpop.f32.mrf.mxu0
        %v596 = vadd.f32 0.0, %v595
        %597 = vmatmul.f32.gmra.mxu0 %v562
        %v598 = vpop.f32.mrf.mxu0
        %v599 = vadd.f32 0.0, %v598
        %600 = vmatmul.f32.gmra.mxu0 %v564
        %v601 = vpop.f32.mrf.mxu0
        %v602 = vadd.f32 0.0, %v601
        %603 = vdwg.mxu0
        %v604 = vadd.f32 %v523, %v587
        %v605 = vadd.f32 %v524, %v590
        %v606 = vadd.f32 %v525, %v593
        %v607 = vadd.f32 %v526, %v596
        %v608 = vadd.f32 %v527, %v599
        %v609 = vadd.f32 %v528, %v602
        %v611 = vrot.slane %v379, 1
        %v612 = vrot.slane %v380, 1
        %v613 = vsel %vm535, %v611, %v612
        %v614 = vsel %vm383, %v613, 0
        %v617 = vsel %vm402, %v341, 0
        %619 = vmatpush.msra.mxu0 0.0
        %620 = vmatpush.msra.mxu0 0.0
        %621 = vmatpush.msra.mxu0 0.0
        %622 = vmatpush.msra.mxu0 0.0
        %623 = vmatpush.msra.mxu0 0.0
        %624 = vmatpush.msra.mxu0 0.0
        %625 = vmatpush.msra.mxu0 0.0
        %626 = vmatpush.msra.mxu0 0.0
        %627 = vmatpush.msra.mxu0 0.0
        %628 = vmatpush.msra.mxu0 0.0
        %629 = vmatpush.msra.mxu0 0.0
        %630 = vmatpush.msra.mxu0 0.0
        %631 = vmatpush.msra.mxu0 0.0
        %632 = vmatpush.msra.mxu0 0.0
        %633 = vmatpush.msra.mxu0 0.0
        %634 = vmatpush.msra.mxu0 %v617
        %635 = vmatmul.f32.gmra.mxu0 %v556
        %v636 = vpop.f32.mrf.mxu0
        %v637 = vadd.f32 0.0, %v636
        %638 = vmatmul.f32.gmra.mxu0 %v558
        %v639 = vpop.f32.mrf.mxu0
        %v640 = vadd.f32 0.0, %v639
        %641 = vmatmul.f32.gmra.mxu0 %v560
        %v642 = vpop.f32.mrf.mxu0
        %v643 = vadd.f32 0.0, %v642
        %644 = vmatmul.f32.gmra.mxu0 %v562
        %v645 = vpop.f32.mrf.mxu0
        %v646 = vadd.f32 0.0, %v645
        %647 = vmatmul.f32.gmra.mxu0 %v564
        %v648 = vpop.f32.mrf.mxu0
        %v649 = vadd.f32 0.0, %v648
        %650 = vmatmul.f32.gmra.mxu0 %v614
        %v651 = vpop.f32.mrf.mxu0
        %v652 = vadd.f32 0.0, %v651
        %653 = vdwg.mxu0
        %v654 = vadd.f32 %v604, %v637
        %v655 = vadd.f32 %v605, %v640
        %v656 = vadd.f32 %v606, %v643
        %v657 = vadd.f32 %v607, %v646
        %v658 = vadd.f32 %v608, %v649
        %v659 = vadd.f32 %v609, %v652
        %v661 = vrot.slane %v381, 1
        %v662 = vrot.slane %v382, 1
        %v663 = vsel %vm535, %v661, %v662
        %v664 = vsel %vm383, %v663, 0
        %v667 = vsel %vm402, %v344, 0
        %669 = vmatpush.msra.mxu0 0.0
        %670 = vmatpush.msra.mxu0 0.0
        %671 = vmatpush.msra.mxu0 0.0
        %672 = vmatpush.msra.mxu0 0.0
        %673 = vmatpush.msra.mxu0 0.0
        %674 = vmatpush.msra.mxu0 0.0
        %675 = vmatpush.msra.mxu0 0.0
        %676 = vmatpush.msra.mxu0 0.0
        %677 = vmatpush.msra.mxu0 0.0
        %678 = vmatpush.msra.mxu0 0.0
        %679 = vmatpush.msra.mxu0 0.0
        %680 = vmatpush.msra.mxu0 0.0
        %681 = vmatpush.msra.mxu0 0.0
        %682 = vmatpush.msra.mxu0 0.0
        %683 = vmatpush.msra.mxu0 0.0
        %684 = vmatpush.msra.mxu0 %v667
        %685 = vmatmul.f32.gmra.mxu0 %v558
        %v686 = vpop.f32.mrf.mxu0
        %v687 = vadd.f32 0.0, %v686
        %688 = vmatmul.f32.gmra.mxu0 %v560
        %v689 = vpop.f32.mrf.mxu0
        %v690 = vadd.f32 0.0, %v689
        %691 = vmatmul.f32.gmra.mxu0 %v562
        %v692 = vpop.f32.mrf.mxu0
        %v693 = vadd.f32 0.0, %v692
        %694 = vmatmul.f32.gmra.mxu0 %v564
        %v695 = vpop.f32.mrf.mxu0
        %v696 = vadd.f32 0.0, %v695
        %697 = vmatmul.f32.gmra.mxu0 %v614
        %v698 = vpop.f32.mrf.mxu0
        %v699 = vadd.f32 0.0, %v698
        %700 = vmatmul.f32.gmra.mxu0 %v664
        %v701 = vpop.f32.mrf.mxu0
        %v702 = vadd.f32 0.0, %v701
        %703 = vdwg.mxu0
        %v704 = vadd.f32 %v654, %v687
        %v705 = vadd.f32 %v655, %v690
        %v706 = vadd.f32 %v656, %v693
        %v707 = vadd.f32 %v657, %v696
        %v708 = vadd.f32 %v658, %v699
        %v709 = vadd.f32 %v659, %v702
        %vm710 = vcmask 1045504
        %v711 = vrot.slane %v367, 2
        %v712 = vrot.slane %v368, 2
        %v713 = vsel %vm710, %v711, %v712
        %v714 = vrot.slane %v369, 2
        %v715 = vrot.slane %v370, 2
        %v716 = vsel %vm710, %v714, %v715
        %v717 = vrot.slane %v371, 2
        %v718 = vrot.slane %v372, 2
        %v719 = vsel %vm710, %v717, %v718
        %v720 = vrot.slane %v373, 2
        %v721 = vrot.slane %v374, 2
        %v722 = vsel %vm710, %v720, %v721
        %v723 = vrot.slane %v375, 2
        %v724 = vrot.slane %v376, 2
        %v725 = vsel %vm710, %v723, %v724
        %v726 = vrot.slane %v377, 2
        %v727 = vrot.slane %v378, 2
        %v728 = vsel %vm710, %v726, %v727
        %v729 = vsel %vm383, %v713, 0
        %v731 = vsel %vm383, %v716, 0
        %v733 = vsel %vm383, %v719, 0
        %v735 = vsel %vm383, %v722, 0
        %v737 = vsel %vm383, %v725, 0
        %v739 = vsel %vm383, %v728, 0
        %v742 = vsel %vm402, %v339, 0
        %744 = vmatpush.msra.mxu0 0.0
        %745 = vmatpush.msra.mxu0 0.0
        %746 = vmatpush.msra.mxu0 0.0
        %747 = vmatpush.msra.mxu0 0.0
        %748 = vmatpush.msra.mxu0 0.0
        %749 = vmatpush.msra.mxu0 0.0
        %750 = vmatpush.msra.mxu0 0.0
        %751 = vmatpush.msra.mxu0 0.0
        %752 = vmatpush.msra.mxu0 0.0
        %753 = vmatpush.msra.mxu0 0.0
        %754 = vmatpush.msra.mxu0 0.0
        %755 = vmatpush.msra.mxu0 0.0
        %756 = vmatpush.msra.mxu0 0.0
        %757 = vmatpush.msra.mxu0 0.0
        %758 = vmatpush.msra.mxu0 0.0
        %759 = vmatpush.msra.mxu0 %v742
        %760 = vmatmul.f32.gmra.mxu0 %v729
        %v761 = vpop.f32.mrf.mxu0
        %v762 = vadd.f32 0.0, %v761
        %763 = vmatmul.f32.gmra.mxu0 %v731
        %v764 = vpop.f32.mrf.mxu0
        %v765 = vadd.f32 0.0, %v764
        %766 = vmatmul.f32.gmra.mxu0 %v733
        %v767 = vpop.f32.mrf.mxu0
        %v768 = vadd.f32 0.0, %v767
        %769 = vmatmul.f32.gmra.mxu0 %v735
        %v770 = vpop.f32.mrf.mxu0
        %v771 = vadd.f32 0.0, %v770
        %772 = vmatmul.f32.gmra.mxu0 %v737
        %v773 = vpop.f32.mrf.mxu0
        %v774 = vadd.f32 0.0, %v773
        %775 = vmatmul.f32.gmra.mxu0 %v739
        %v776 = vpop.f32.mrf.mxu0
        %v777 = vadd.f32 0.0, %v776
        %778 = vdwg.mxu0
        %v779 = vadd.f32 %v704, %v762
        %v780 = vadd.f32 %v705, %v765
        %v781 = vadd.f32 %v706, %v768
        %v782 = vadd.f32 %v707, %v771
        %v783 = vadd.f32 %v708, %v774
        %v784 = vadd.f32 %v709, %v777
        %v785 = vrot.slane %v379, 2
        %v786 = vrot.slane %v380, 2
        %v787 = vsel %vm710, %v785, %v786
        %v788 = vsel %vm383, %v787, 0
        %v791 = vsel %vm402, %v342, 0
        %793 = vmatpush.msra.mxu0 0.0
        %794 = vmatpush.msra.mxu0 0.0
        %795 = vmatpush.msra.mxu0 0.0
        %796 = vmatpush.msra.mxu0 0.0
        %797 = vmatpush.msra.mxu0 0.0
        %798 = vmatpush.msra.mxu0 0.0
        %799 = vmatpush.msra.mxu0 0.0
        %800 = vmatpush.msra.mxu0 0.0
        %801 = vmatpush.msra.mxu0 0.0
        %802 = vmatpush.msra.mxu0 0.0
        %803 = vmatpush.msra.mxu0 0.0
        %804 = vmatpush.msra.mxu0 0.0
        %805 = vmatpush.msra.mxu0 0.0
        %806 = vmatpush.msra.mxu0 0.0
        %807 = vmatpush.msra.mxu0 0.0
        %808 = vmatpush.msra.mxu0 %v791
        %809 = vmatmul.f32.gmra.mxu0 %v731
        %v810 = vpop.f32.mrf.mxu0
        %v811 = vadd.f32 0.0, %v810
        %812 = vmatmul.f32.gmra.mxu0 %v733
        %v813 = vpop.f32.mrf.mxu0
        %v814 = vadd.f32 0.0, %v813
        %815 = vmatmul.f32.gmra.mxu0 %v735
        %v816 = vpop.f32.mrf.mxu0
        %v817 = vadd.f32 0.0, %v816
        %818 = vmatmul.f32.gmra.mxu0 %v737
        %v819 = vpop.f32.mrf.mxu0
        %v820 = vadd.f32 0.0, %v819
        %821 = vmatmul.f32.gmra.mxu0 %v739
        %v822 = vpop.f32.mrf.mxu0
        %v823 = vadd.f32 0.0, %v822
        %824 = vmatmul.f32.gmra.mxu0 %v788
        %v825 = vpop.f32.mrf.mxu0
        %v826 = vadd.f32 0.0, %v825
        %827 = vdwg.mxu0
        %v828 = vadd.f32 %v779, %v811
        %v829 = vadd.f32 %v780, %v814
        %v830 = vadd.f32 %v781, %v817
        %v831 = vadd.f32 %v782, %v820
        %v832 = vadd.f32 %v783, %v823
        %v833 = vadd.f32 %v784, %v826
        %v834 = vrot.slane %v381, 2
        %v835 = vrot.slane %v382, 2
        %v836 = vsel %vm710, %v834, %v835
        %v837 = vsel %vm383, %v836, 0
        %v840 = vsel %vm402, %v345, 0
        %842 = vmatpush.msra.mxu0 0.0
        %843 = vmatpush.msra.mxu0 0.0
        %844 = vmatpush.msra.mxu0 0.0
        %845 = vmatpush.msra.mxu0 0.0
        %846 = vmatpush.msra.mxu0 0.0
        %847 = vmatpush.msra.mxu0 0.0
        %848 = vmatpush.msra.mxu0 0.0
        %849 = vmatpush.msra.mxu0 0.0
        %850 = vmatpush.msra.mxu0 0.0
        %851 = vmatpush.msra.mxu0 0.0
        %852 = vmatpush.msra.mxu0 0.0
        %853 = vmatpush.msra.mxu0 0.0
        %854 = vmatpush.msra.mxu0 0.0
        %855 = vmatpush.msra.mxu0 0.0
        %856 = vmatpush.msra.mxu0 0.0
        %857 = vmatpush.msra.mxu0 %v840
        %858 = vmatmul.f32.gmra.mxu0 %v733
        %v859 = vpop.f32.mrf.mxu0
        %v860 = vadd.f32 0.0, %v859
        %861 = vmatmul.f32.gmra.mxu0 %v735
        %v862 = vpop.f32.mrf.mxu0
        %v863 = vadd.f32 0.0, %v862
        %864 = vmatmul.f32.gmra.mxu0 %v737
        %v865 = vpop.f32.mrf.mxu0
        %v866 = vadd.f32 0.0, %v865
        %867 = vmatmul.f32.gmra.mxu0 %v739
        %v868 = vpop.f32.mrf.mxu0
        %v869 = vadd.f32 0.0, %v868
        %870 = vmatmul.f32.gmra.mxu0 %v788
        %v871 = vpop.f32.mrf.mxu0
        %v872 = vadd.f32 0.0, %v871
        %873 = vmatmul.f32.gmra.mxu0 %v837
        %v874 = vpop.f32.mrf.mxu0
        %v875 = vadd.f32 0.0, %v874
        %876 = vdwg.mxu0
        %v877 = vadd.f32 %v828, %v860
        %v878 = vadd.f32 %v829, %v863
        %v879 = vadd.f32 %v830, %v866
        %v880 = vadd.f32 %v831, %v869
        %v881 = vadd.f32 %v832, %v872
        %v882 = vadd.f32 %v833, %v875
        %v883 = vmin.f32 %v877, 20.0
        %v884 = vmin.f32 %v878, 20.0
        %v885 = vmin.f32 %v879, 20.0
        %v886 = vmin.f32 %v880, 20.0
        %v887 = vmin.f32 %v881, 20.0
        %v888 = vmin.f32 %v882, 20.0
        %v889 = vmul.f32 %v883, 1.442695
        %v890 = vpow.pop %v889
        %v891 = vmul.f32 %v884, 1.442695
        %v892 = vpow.pop %v891
        %v893 = vmul.f32 %v885, 1.442695
        %v894 = vpow.pop %v893
        %v895 = vmul.f32 %v886, 1.442695
        %v896 = vpow.pop %v895
        %v897 = vmul.f32 %v887, 1.442695
        %v898 = vpow.pop %v897
        %v899 = vmul.f32 %v888, 1.442695
        %v900 = vpow.pop %v899
        %v901 = vadd.f32 %v890, 1.0
        %v902 = vadd.f32 %v892, 1.0
        %v903 = vadd.f32 %v894, 1.0
        %v904 = vadd.f32 %v896, 1.0
        %v905 = vadd.f32 %v898, 1.0
        %v906 = vadd.f32 %v900, 1.0
        %v907 = vmul.f32 %v901, %v901
        %v908 = vmul.f32 %v902, %v902
        %v909 = vmul.f32 %v903, %v903
        %v910 = vmul.f32 %v904, %v904
        %v911 = vmul.f32 %v905, %v905
        %v912 = vmul.f32 %v906, %v906
        %v913 = vsub.f32 %v907, 1.0
        %v914 = vsub.f32 %v908, 1.0
        %v915 = vsub.f32 %v909, 1.0
        %v916 = vsub.f32 %v910, 1.0
        %v917 = vsub.f32 %v911, 1.0
        %v918 = vsub.f32 %v912, 1.0
        %v919 = vmul.f32 %v877, %v913
        %v920 = vmul.f32 %v878, %v914
        %v921 = vmul.f32 %v879, %v915
        %v922 = vmul.f32 %v880, %v916
        %v923 = vmul.f32 %v881, %v917
        %v924 = vmul.f32 %v882, %v918
        %v925 = vadd.f32 %v907, 1.0
        %v926 = vadd.f32 %v908, 1.0
        %v927 = vadd.f32 %v909, 1.0
        %v928 = vadd.f32 %v910, 1.0
        %v929 = vadd.f32 %v911, 1.0
        %v930 = vadd.f32 %v912, 1.0
        %v931 = vrcp.pop %v925
        %v932 = vmul.f32 %v925, %v931
        %v933 = vsub.f32 1.0, %v932
        %v934 = vmul.f32 %v931, %v933
        %v935 = vadd.f32 %v931, %v934
        %vm936 = vweird.f32 %v925
        %vm937 = vweird.f32 %v931
        %vm938 = vmor %vm936, %vm937
        %v939 = vsel %vm938, %v931, %v935
        %v940 = vand.u32 2147483647, %v925
        %vm941 = vcmp.eq.f32.partialorder %v940, 8.507059e+37
        %v942 = vand.u32 %v925, 2147483648
        %v943 = vor.u32 1.1754944e-38, %v942
        %v944 = vsel %vm941, %v943, %v939
        %v945 = vmul.f32 %v919, %v944
        %v946 = vrcp.pop %v926
        %v947 = vmul.f32 %v926, %v946
        %v948 = vsub.f32 1.0, %v947
        %v949 = vmul.f32 %v946, %v948
        %v950 = vadd.f32 %v946, %v949
        %vm951 = vweird.f32 %v926
        %vm952 = vweird.f32 %v946
        %vm953 = vmor %vm951, %vm952
        %v954 = vsel %vm953, %v946, %v950
        %v955 = vand.u32 2147483647, %v926
        %vm956 = vcmp.eq.f32.partialorder %v955, 8.507059e+37
        %v957 = vand.u32 %v926, 2147483648
        %v958 = vor.u32 1.1754944e-38, %v957
        %v959 = vsel %vm956, %v958, %v954
        %v960 = vmul.f32 %v920, %v959
        %v961 = vrcp.pop %v927
        %v962 = vmul.f32 %v927, %v961
        %v963 = vsub.f32 1.0, %v962
        %v964 = vmul.f32 %v961, %v963
        %v965 = vadd.f32 %v961, %v964
        %vm966 = vweird.f32 %v927
        %vm967 = vweird.f32 %v961
        %vm968 = vmor %vm966, %vm967
        %v969 = vsel %vm968, %v961, %v965
        %v970 = vand.u32 2147483647, %v927
        %vm971 = vcmp.eq.f32.partialorder %v970, 8.507059e+37
        %v972 = vand.u32 %v927, 2147483648
        %v973 = vor.u32 1.1754944e-38, %v972
        %v974 = vsel %vm971, %v973, %v969
        %v975 = vmul.f32 %v921, %v974
        %v976 = vrcp.pop %v928
        %v977 = vmul.f32 %v928, %v976
        %v978 = vsub.f32 1.0, %v977
        %v979 = vmul.f32 %v976, %v978
        %v980 = vadd.f32 %v976, %v979
        %vm981 = vweird.f32 %v928
        %vm982 = vweird.f32 %v976
        %vm983 = vmor %vm981, %vm982
        %v984 = vsel %vm983, %v976, %v980
        %v985 = vand.u32 2147483647, %v928
        %vm986 = vcmp.eq.f32.partialorder %v985, 8.507059e+37
        %v987 = vand.u32 %v928, 2147483648
        %v988 = vor.u32 1.1754944e-38, %v987
        %v989 = vsel %vm986, %v988, %v984
        %v990 = vmul.f32 %v922, %v989
        %v991 = vrcp.pop %v929
        %v992 = vmul.f32 %v929, %v991
        %v993 = vsub.f32 1.0, %v992
        %v994 = vmul.f32 %v991, %v993
        %v995 = vadd.f32 %v991, %v994
        %vm996 = vweird.f32 %v929
        %vm997 = vweird.f32 %v991
        %vm998 = vmor %vm996, %vm997
        %v999 = vsel %vm998, %v991, %v995
        %v1000 = vand.u32 2147483647, %v929
        %vm1001 = vcmp.eq.f32.partialorder %v1000, 8.507059e+37
        %v1002 = vand.u32 %v929, 2147483648
        %v1003 = vor.u32 1.1754944e-38, %v1002
        %v1004 = vsel %vm1001, %v1003, %v999
        %v1005 = vmul.f32 %v923, %v1004
        %v1006 = vrcp.pop %v930
        %v1007 = vmul.f32 %v930, %v1006
        %v1008 = vsub.f32 1.0, %v1007
        %v1009 = vmul.f32 %v1006, %v1008
        %v1010 = vadd.f32 %v1006, %v1009
        %vm1011 = vweird.f32 %v930
        %vm1012 = vweird.f32 %v1006
        %vm1013 = vmor %vm1011, %vm1012
        %v1014 = vsel %vm1013, %v1006, %v1010
        %v1015 = vand.u32 2147483647, %v930
        %vm1016 = vcmp.eq.f32.partialorder %v1015, 8.507059e+37
        %v1017 = vand.u32 %v930, 2147483648
        %v1018 = vor.u32 1.1754944e-38, %v1017
        %v1019 = vsel %vm1016, %v1018, %v1014
        %v1020 = vmul.f32 %v924, %v1019
        %vm1021 = vcmp.gt.f32.partialorder %v877, 20.0
        %vm1022 = vcmp.gt.f32.partialorder %v878, 20.0
        %vm1023 = vcmp.gt.f32.partialorder %v879, 20.0
        %vm1024 = vcmp.gt.f32.partialorder %v880, 20.0
        %vm1025 = vcmp.gt.f32.partialorder %v881, 20.0
        %vm1026 = vcmp.gt.f32.partialorder %v882, 20.0
        %v1027 = vsel %vm1021, %v877, %v945
        %v1028 = vsel %vm1022, %v878, %v960
        %v1029 = vsel %vm1023, %v879, %v975
        %v1030 = vsel %vm1024, %v880, %v990
        %v1031 = vsel %vm1025, %v881, %v1005
        %v1032 = vsel %vm1026, %v882, %v1020
        %vm1033 = vcmask 57344
        %1034 = vst.msk [vmem:[#allocation2 + $0x7] sm:$0x1] %vm1033, 0.0
        %1035 = vst.msk [vmem:[#allocation2 + $0x1f] sm:$0x1] %vm1033, 0.0
        %1036 = vst.msk [vmem:[#allocation2 + $0x37] sm:$0x1] %vm1033, 0.0
        %1037 = vst.msk [vmem:[#allocation2 + $0x4f] sm:$0x1] %vm1033, 0.0
        %1038 = vst.msk [vmem:[#allocation2 + $0x67] sm:$0x1] %vm1033, 0.0
        %1039 = vst.msk [vmem:[#allocation2 + $0x7f] sm:$0x1] %vm1033, 0.0
        %1040 = vst.msk [vmem:[#allocation2 + $0x10] sm:$0x1] %vm1033, 0.0
        %1041 = vst.msk [vmem:[#allocation2 + $0x28] sm:$0x1] %vm1033, 0.0
        %1042 = vst.msk [vmem:[#allocation2 + $0x40] sm:$0x1] %vm1033, 0.0
        %1043 = vst.msk [vmem:[#allocation2 + $0x58] sm:$0x1] %vm1033, 0.0
        %1044 = vst.msk [vmem:[#allocation2 + $0x70] sm:$0x1] %vm1033, 0.0
        %1045 = vst.msk [vmem:[#allocation2 + $0x88] sm:$0x1] %vm1033, 0.0
        %vm1046 = vcmask 64512
        %1047 = vst.msk [vmem:[#allocation2 + $0x8] sm:$0xff] %vm1046, %v1027
        %1048 = vst.msk [vmem:[#allocation2 + $0x20] sm:$0xff] %vm1046, %v1028
        %1049 = vst.msk [vmem:[#allocation2 + $0x38] sm:$0xff] %vm1046, %v1029
        %1050 = vst.msk [vmem:[#allocation2 + $0x50] sm:$0xff] %vm1046, %v1030
        %1051 = vst.msk [vmem:[#allocation2 + $0x68] sm:$0xff] %vm1046, %v1031
        %1052 = vst.msk [vmem:[#allocation2 + $0x80] sm:$0xff] %vm1046, %v1032
        %p1053 = scmp.eq.s32.totalorder %s26, 0
        // Predicated region
        $region49: #{tpu_custom_call.1} parent=47 // pred_check
          %p1054 = pneg %p1053
        $region50: #{tpu_custom_call.1} parent=47 // pred_check_branch
          %1056 = sbr.rel (%p1054) target = $region52
        $region51: #{tpu_custom_call.1} parent=47 // pred_region
          %1057 = vst.msk [vmem:[#allocation2 + $0x7] sm:$0xff] %vm1046, 0.0
          %vm1058 = vcmask 58368
          %1059 = vst.msk [vmem:[#allocation2 + $0xf] sm:$0x3] %vm1058, 0.0
        $region52: #{tpu_custom_call.1} parent=47 // pred_fallthru
          _
        %p1060 = scmp.eq.s32.totalorder %s26, 1
        // Predicated region
        $region53: #{tpu_custom_call.1} parent=47 // pred_check
          %p1061 = pneg %p1060
        $region54: #{tpu_custom_call.1} parent=47 // pred_check_branch
          %1063 = sbr.rel (%p1061) target = $region56
        $region55: #{tpu_custom_call.1} parent=47 // pred_region
          %s1064 = scalar_lea.vmem [#allocation2], 120
          %1065 = vst.msk [vmem:[%s1064 + $0x7] sm:$0xff] %vm1046, 0.0
          %vm1066 = vcmask 58368
          %1067 = vst.msk [vmem:[%s1064 + $0xf] sm:$0x3] %vm1066, 0.0
        $region56: #{tpu_custom_call.1} parent=47 // pred_fallthru
          _
        %v1068 = vld [vmem:[#allocation2 + $0x7] sm:$0xff]
        %v1069 = vld [vmem:[#allocation2 + $0xf] sm:$0x3]
        %v1070 = vld [vmem:[#allocation2 + $0x1f] sm:$0xff]
        %v1071 = vld [vmem:[#allocation2 + $0x27] sm:$0x3]
        %v1072 = vld [vmem:[#allocation2 + $0x37] sm:$0xff]
        %v1073 = vld [vmem:[#allocation2 + $0x3f] sm:$0x3]
        %v1074 = vld [vmem:[#allocation2 + $0x4f] sm:$0xff]
        %v1075 = vld [vmem:[#allocation2 + $0x57] sm:$0x3]
        %v1076 = vld [vmem:[#allocation2 + $0x67] sm:$0xff]
        %v1077 = vld [vmem:[#allocation2 + $0x6f] sm:$0x3]
        %v1078 = vld [vmem:[#allocation2 + $0x7f] sm:$0xff]
        %v1079 = vld [vmem:[#allocation2 + $0x87] sm:$0x3]
        %v1081 = vsel %vm1046, %v1070, 0
        %v1084 = vsel %vm1046, %v1072, 0
        %v1087 = vsel %vm1046, %v1074, 0
        %v1090 = vsel %vm1046, %v1076, 0
        %1092 = vmatpush.msra.mxu0 0.0
        %1093 = vmatpush.msra.mxu0 0.0
        %1094 = vmatpush.msra.mxu0 0.0
        %1095 = vmatpush.msra.mxu0 0.0
        %1096 = vmatpush.msra.mxu0 0.0
        %1097 = vmatpush.msra.mxu0 0.0
        %1098 = vmatpush.msra.mxu0 0.0
        %1099 = vmatpush.msra.mxu0 0.0
        %1100 = vmatpush.msra.mxu0 0.0
        %1101 = vmatpush.msra.mxu0 0.0
        %1102 = vmatpush.msra.mxu0 0.0
        %1103 = vmatpush.msra.mxu0 0.0
        %1104 = vmatpush.msra.mxu0 0.0
        %1105 = vmatpush.msra.mxu0 0.0
        %1106 = vmatpush.msra.mxu0 0.0
        %1107 = vmatpush.msra.mxu0 %v359
        %1108 = vmatmul.f32.gmra.mxu0 %v1081
        %v1109 = vpop.f32.mrf.mxu0
        %v1110 = vadd.f32 0.0, %v1109
        %1111 = vmatmul.f32.gmra.mxu0 %v1084
        %v1112 = vpop.f32.mrf.mxu0
        %v1113 = vadd.f32 0.0, %v1112
        %1114 = vmatmul.f32.gmra.mxu0 %v1087
        %v1115 = vpop.f32.mrf.mxu0
        %v1116 = vadd.f32 0.0, %v1115
        %1117 = vmatmul.f32.gmra.mxu0 %v1090
        %v1118 = vpop.f32.mrf.mxu0
        %v1119 = vadd.f32 0.0, %v1118
        %1120 = vdwg.mxu0
        %v1122 = vsel %vm1046, %v1068, 0
        %1124 = vmatpush.msra.mxu0 0.0
        %1125 = vmatpush.msra.mxu0 0.0
        %1126 = vmatpush.msra.mxu0 0.0
        %1127 = vmatpush.msra.mxu0 0.0
        %1128 = vmatpush.msra.mxu0 0.0
        %1129 = vmatpush.msra.mxu0 0.0
        %1130 = vmatpush.msra.mxu0 0.0
        %1131 = vmatpush.msra.mxu0 0.0
        %1132 = vmatpush.msra.mxu0 0.0
        %1133 = vmatpush.msra.mxu0 0.0
        %1134 = vmatpush.msra.mxu0 0.0
        %1135 = vmatpush.msra.mxu0 0.0
        %1136 = vmatpush.msra.mxu0 0.0
        %1137 = vmatpush.msra.mxu0 0.0
        %1138 = vmatpush.msra.mxu0 0.0
        %1139 = vmatpush.msra.mxu0 %v356
        %1140 = vmatmul.f32.gmra.mxu0 %v1122
        %v1141 = vpop.f32.mrf.mxu0
        %v1142 = vadd.f32 %v1110, %v1141
        %1143 = vmatmul.f32.gmra.mxu0 %v1081
        %v1144 = vpop.f32.mrf.mxu0
        %v1145 = vadd.f32 %v1113, %v1144
        %1146 = vmatmul.f32.gmra.mxu0 %v1084
        %v1147 = vpop.f32.mrf.mxu0
        %v1148 = vadd.f32 %v1116, %v1147
        %1149 = vmatmul.f32.gmra.mxu0 %v1087
        %v1150 = vpop.f32.mrf.mxu0
        %v1151 = vadd.f32 %v1119, %v1150
        %1152 = vdwg.mxu0
        %v1154 = vsel %vm1046, %v1078, 0
        %1156 = vmatpush.msra.mxu0 0.0
        %1157 = vmatpush.msra.mxu0 0.0
        %1158 = vmatpush.msra.mxu0 0.0
        %1159 = vmatpush.msra.mxu0 0.0
        %1160 = vmatpush.msra.mxu0 0.0
        %1161 = vmatpush.msra.mxu0 0.0
        %1162 = vmatpush.msra.mxu0 0.0
        %1163 = vmatpush.msra.mxu0 0.0
        %1164 = vmatpush.msra.mxu0 0.0
        %1165 = vmatpush.msra.mxu0 0.0
        %1166 = vmatpush.msra.mxu0 0.0
        %1167 = vmatpush.msra.mxu0 0.0
        %1168 = vmatpush.msra.mxu0 0.0
        %1169 = vmatpush.msra.mxu0 0.0
        %1170 = vmatpush.msra.mxu0 0.0
        %1171 = vmatpush.msra.mxu0 %v362
        %1172 = vmatmul.f32.gmra.mxu0 %v1084
        %v1173 = vpop.f32.mrf.mxu0
        %v1174 = vadd.f32 0.0, %v1173
        %1175 = vmatmul.f32.gmra.mxu0 %v1087
        %v1176 = vpop.f32.mrf.mxu0
        %v1177 = vadd.f32 0.0, %v1176
        %1178 = vmatmul.f32.gmra.mxu0 %v1090
        %v1179 = vpop.f32.mrf.mxu0
        %v1180 = vadd.f32 0.0, %v1179
        %1181 = vmatmul.f32.gmra.mxu0 %v1154
        %v1182 = vpop.f32.mrf.mxu0
        %v1183 = vadd.f32 0.0, %v1182
        %1184 = vdwg.mxu0
        %v1185 = vadd.f32 %v1142, %v1174
        %v1186 = vadd.f32 %v1145, %v1177
        %v1187 = vadd.f32 %v1148, %v1180
        %v1188 = vadd.f32 %v1151, %v1183
        %v1193 = vrot.slane %v1068, 1
        %v1194 = vrot.slane %v1069, 1
        %v1195 = vsel %vm535, %v1193, %v1194
        %v1196 = vrot.slane %v1070, 1
        %v1197 = vrot.slane %v1071, 1
        %v1198 = vsel %vm535, %v1196, %v1197
        %v1199 = vrot.slane %v1072, 1
        %v1200 = vrot.slane %v1073, 1
        %v1201 = vsel %vm535, %v1199, %v1200
        %v1202 = vrot.slane %v1074, 1
        %v1203 = vrot.slane %v1075, 1
        %v1204 = vsel %vm535, %v1202, %v1203
        %v1205 = vsel %vm1046, %v1195, 0
        %v1207 = vsel %vm1046, %v1198, 0
        %v1209 = vsel %vm1046, %v1201, 0
        %v1211 = vsel %vm1046, %v1204, 0
        %1213 = vmatpush.msra.mxu0 0.0
        %1214 = vmatpush.msra.mxu0 0.0
        %1215 = vmatpush.msra.mxu0 0.0
        %1216 = vmatpush.msra.mxu0 0.0
        %1217 = vmatpush.msra.mxu0 0.0
        %1218 = vmatpush.msra.mxu0 0.0
        %1219 = vmatpush.msra.mxu0 0.0
        %1220 = vmatpush.msra.mxu0 0.0
        %1221 = vmatpush.msra.mxu0 0.0
        %1222 = vmatpush.msra.mxu0 0.0
        %1223 = vmatpush.msra.mxu0 0.0
        %1224 = vmatpush.msra.mxu0 0.0
        %1225 = vmatpush.msra.mxu0 0.0
        %1226 = vmatpush.msra.mxu0 0.0
        %1227 = vmatpush.msra.mxu0 0.0
        %1228 = vmatpush.msra.mxu0 %v357
        %1229 = vmatmul.f32.gmra.mxu0 %v1205
        %v1230 = vpop.f32.mrf.mxu0
        %v1231 = vadd.f32 0.0, %v1230
        %1232 = vmatmul.f32.gmra.mxu0 %v1207
        %v1233 = vpop.f32.mrf.mxu0
        %v1234 = vadd.f32 0.0, %v1233
        %1235 = vmatmul.f32.gmra.mxu0 %v1209
        %v1236 = vpop.f32.mrf.mxu0
        %v1237 = vadd.f32 0.0, %v1236
        %1238 = vmatmul.f32.gmra.mxu0 %v1211
        %v1239 = vpop.f32.mrf.mxu0
        %v1240 = vadd.f32 0.0, %v1239
        %1241 = vdwg.mxu0
        %v1242 = vadd.f32 %v1185, %v1231
        %v1243 = vadd.f32 %v1186, %v1234
        %v1244 = vadd.f32 %v1187, %v1237
        %v1245 = vadd.f32 %v1188, %v1240
        %v1247 = vrot.slane %v1076, 1
        %v1248 = vrot.slane %v1077, 1
        %v1249 = vsel %vm535, %v1247, %v1248
        %v1250 = vsel %vm1046, %v1249, 0
        %1252 = vmatpush.msra.mxu0 0.0
        %1253 = vmatpush.msra.mxu0 0.0
        %1254 = vmatpush.msra.mxu0 0.0
        %1255 = vmatpush.msra.mxu0 0.0
        %1256 = vmatpush.msra.mxu0 0.0
        %1257 = vmatpush.msra.mxu0 0.0
        %1258 = vmatpush.msra.mxu0 0.0
        %1259 = vmatpush.msra.mxu0 0.0
        %1260 = vmatpush.msra.mxu0 0.0
        %1261 = vmatpush.msra.mxu0 0.0
        %1262 = vmatpush.msra.mxu0 0.0
        %1263 = vmatpush.msra.mxu0 0.0
        %1264 = vmatpush.msra.mxu0 0.0
        %1265 = vmatpush.msra.mxu0 0.0
        %1266 = vmatpush.msra.mxu0 0.0
        %1267 = vmatpush.msra.mxu0 %v360
        %1268 = vmatmul.f32.gmra.mxu0 %v1207
        %v1269 = vpop.f32.mrf.mxu0
        %v1270 = vadd.f32 0.0, %v1269
        %1271 = vmatmul.f32.gmra.mxu0 %v1209
        %v1272 = vpop.f32.mrf.mxu0
        %v1273 = vadd.f32 0.0, %v1272
        %1274 = vmatmul.f32.gmra.mxu0 %v1211
        %v1275 = vpop.f32.mrf.mxu0
        %v1276 = vadd.f32 0.0, %v1275
        %1277 = vmatmul.f32.gmra.mxu0 %v1250
        %v1278 = vpop.f32.mrf.mxu0
        %v1279 = vadd.f32 0.0, %v1278
        %1280 = vdwg.mxu0
        %v1281 = vadd.f32 %v1242, %v1270
        %v1282 = vadd.f32 %v1243, %v1273
        %v1283 = vadd.f32 %v1244, %v1276
        %v1284 = vadd.f32 %v1245, %v1279
        %v1286 = vrot.slane %v1078, 1
        %v1287 = vrot.slane %v1079, 1
        %v1288 = vsel %vm535, %v1286, %v1287
        %v1289 = vsel %vm1046, %v1288, 0
        %1291 = vmatpush.msra.mxu0 0.0
        %1292 = vmatpush.msra.mxu0 0.0
        %1293 = vmatpush.msra.mxu0 0.0
        %1294 = vmatpush.msra.mxu0 0.0
        %1295 = vmatpush.msra.mxu0 0.0
        %1296 = vmatpush.msra.mxu0 0.0
        %1297 = vmatpush.msra.mxu0 0.0
        %1298 = vmatpush.msra.mxu0 0.0
        %1299 = vmatpush.msra.mxu0 0.0
        %1300 = vmatpush.msra.mxu0 0.0
        %1301 = vmatpush.msra.mxu0 0.0
        %1302 = vmatpush.msra.mxu0 0.0
        %1303 = vmatpush.msra.mxu0 0.0
        %1304 = vmatpush.msra.mxu0 0.0
        %1305 = vmatpush.msra.mxu0 0.0
        %1306 = vmatpush.msra.mxu0 %v363
        %1307 = vmatmul.f32.gmra.mxu0 %v1209
        %v1308 = vpop.f32.mrf.mxu0
        %v1309 = vadd.f32 0.0, %v1308
        %1310 = vmatmul.f32.gmra.mxu0 %v1211
        %v1311 = vpop.f32.mrf.mxu0
        %v1312 = vadd.f32 0.0, %v1311
        %1313 = vmatmul.f32.gmra.mxu0 %v1250
        %v1314 = vpop.f32.mrf.mxu0
        %v1315 = vadd.f32 0.0, %v1314
        %1316 = vmatmul.f32.gmra.mxu0 %v1289
        %v1317 = vpop.f32.mrf.mxu0
        %v1318 = vadd.f32 0.0, %v1317
        %1319 = vdwg.mxu0
        %v1320 = vadd.f32 %v1281, %v1309
        %v1321 = vadd.f32 %v1282, %v1312
        %v1322 = vadd.f32 %v1283, %v1315
        %v1323 = vadd.f32 %v1284, %v1318
        %v1324 = vrot.slane %v1068, 2
        %v1325 = vrot.slane %v1069, 2
        %v1326 = vsel %vm710, %v1324, %v1325
        %v1327 = vrot.slane %v1070, 2
        %v1328 = vrot.slane %v1071, 2
        %v1329 = vsel %vm710, %v1327, %v1328
        %v1330 = vrot.slane %v1072, 2
        %v1331 = vrot.slane %v1073, 2
        %v1332 = vsel %vm710, %v1330, %v1331
        %v1333 = vrot.slane %v1074, 2
        %v1334 = vrot.slane %v1075, 2
        %v1335 = vsel %vm710, %v1333, %v1334
        %v1336 = vsel %vm1046, %v1326, 0
        %v1338 = vsel %vm1046, %v1329, 0
        %v1340 = vsel %vm1046, %v1332, 0
        %v1342 = vsel %vm1046, %v1335, 0
        %1344 = vmatpush.msra.mxu0 0.0
        %1345 = vmatpush.msra.mxu0 0.0
        %1346 = vmatpush.msra.mxu0 0.0
        %1347 = vmatpush.msra.mxu0 0.0
        %1348 = vmatpush.msra.mxu0 0.0
        %1349 = vmatpush.msra.mxu0 0.0
        %1350 = vmatpush.msra.mxu0 0.0
        %1351 = vmatpush.msra.mxu0 0.0
        %1352 = vmatpush.msra.mxu0 0.0
        %1353 = vmatpush.msra.mxu0 0.0
        %1354 = vmatpush.msra.mxu0 0.0
        %1355 = vmatpush.msra.mxu0 0.0
        %1356 = vmatpush.msra.mxu0 0.0
        %1357 = vmatpush.msra.mxu0 0.0
        %1358 = vmatpush.msra.mxu0 0.0
        %1359 = vmatpush.msra.mxu0 %v358
        %1360 = vmatmul.f32.gmra.mxu0 %v1336
        %v1361 = vpop.f32.mrf.mxu0
        %v1362 = vadd.f32 0.0, %v1361
        %1363 = vmatmul.f32.gmra.mxu0 %v1338
        %v1364 = vpop.f32.mrf.mxu0
        %v1365 = vadd.f32 0.0, %v1364
        %1366 = vmatmul.f32.gmra.mxu0 %v1340
        %v1367 = vpop.f32.mrf.mxu0
        %v1368 = vadd.f32 0.0, %v1367
        %1369 = vmatmul.f32.gmra.mxu0 %v1342
        %v1370 = vpop.f32.mrf.mxu0
        %v1371 = vadd.f32 0.0, %v1370
        %1372 = vdwg.mxu0
        %v1373 = vadd.f32 %v1320, %v1362
        %v1374 = vadd.f32 %v1321, %v1365
        %v1375 = vadd.f32 %v1322, %v1368
        %v1376 = vadd.f32 %v1323, %v1371
        %v1377 = vrot.slane %v1076, 2
        %v1378 = vrot.slane %v1077, 2
        %v1379 = vsel %vm710, %v1377, %v1378
        %v1380 = vsel %vm1046, %v1379, 0
        %1382 = vmatpush.msra.mxu0 0.0
        %1383 = vmatpush.msra.mxu0 0.0
        %1384 = vmatpush.msra.mxu0 0.0
        %1385 = vmatpush.msra.mxu0 0.0
        %1386 = vmatpush.msra.mxu0 0.0
        %1387 = vmatpush.msra.mxu0 0.0
        %1388 = vmatpush.msra.mxu0 0.0
        %1389 = vmatpush.msra.mxu0 0.0
        %1390 = vmatpush.msra.mxu0 0.0
        %1391 = vmatpush.msra.mxu0 0.0
        %1392 = vmatpush.msra.mxu0 0.0
        %1393 = vmatpush.msra.mxu0 0.0
        %1394 = vmatpush.msra.mxu0 0.0
        %1395 = vmatpush.msra.mxu0 0.0
        %1396 = vmatpush.msra.mxu0 0.0
        %1397 = vmatpush.msra.mxu0 %v361
        %1398 = vmatmul.f32.gmra.mxu0 %v1338
        %v1399 = vpop.f32.mrf.mxu0
        %v1400 = vadd.f32 0.0, %v1399
        %1401 = vmatmul.f32.gmra.mxu0 %v1340
        %v1402 = vpop.f32.mrf.mxu0
        %v1403 = vadd.f32 0.0, %v1402
        %1404 = vmatmul.f32.gmra.mxu0 %v1342
        %v1405 = vpop.f32.mrf.mxu0
        %v1406 = vadd.f32 0.0, %v1405
        %1407 = vmatmul.f32.gmra.mxu0 %v1380
        %v1408 = vpop.f32.mrf.mxu0
        %v1409 = vadd.f32 0.0, %v1408
        %1410 = vdwg.mxu0
        %v1411 = vadd.f32 %v1373, %v1400
        %v1412 = vadd.f32 %v1374, %v1403
        %v1413 = vadd.f32 %v1375, %v1406
        %v1414 = vadd.f32 %v1376, %v1409
        %v1415 = vrot.slane %v1078, 2
        %v1416 = vrot.slane %v1079, 2
        %v1417 = vsel %vm710, %v1415, %v1416
        %v1418 = vsel %vm1046, %v1417, 0
        %1420 = vmatpush.msra.mxu0 0.0
        %1421 = vmatpush.msra.mxu0 0.0
        %1422 = vmatpush.msra.mxu0 0.0
        %1423 = vmatpush.msra.mxu0 0.0
        %1424 = vmatpush.msra.mxu0 0.0
        %1425 = vmatpush.msra.mxu0 0.0
        %1426 = vmatpush.msra.mxu0 0.0
        %1427 = vmatpush.msra.mxu0 0.0
        %1428 = vmatpush.msra.mxu0 0.0
        %1429 = vmatpush.msra.mxu0 0.0
        %1430 = vmatpush.msra.mxu0 0.0
        %1431 = vmatpush.msra.mxu0 0.0
        %1432 = vmatpush.msra.mxu0 0.0
        %1433 = vmatpush.msra.mxu0 0.0
        %1434 = vmatpush.msra.mxu0 0.0
        %1435 = vmatpush.msra.mxu0 %v364
        %1436 = vmatmul.f32.gmra.mxu0 %v1340
        %v1437 = vpop.f32.mrf.mxu0
        %v1438 = vadd.f32 0.0, %v1437
        %1439 = vmatmul.f32.gmra.mxu0 %v1342
        %v1440 = vpop.f32.mrf.mxu0
        %v1441 = vadd.f32 0.0, %v1440
        %1442 = vmatmul.f32.gmra.mxu0 %v1380
        %v1443 = vpop.f32.mrf.mxu0
        %v1444 = vadd.f32 0.0, %v1443
        %1445 = vmatmul.f32.gmra.mxu0 %v1418
        %v1446 = vpop.f32.mrf.mxu0
        %v1447 = vadd.f32 0.0, %v1446
        %1448 = vdwg.mxu0
        %v1449 = vadd.f32 %v1411, %v1438
        %v1450 = vadd.f32 %v1412, %v1441
        %v1451 = vadd.f32 %v1413, %v1444
        %v1452 = vadd.f32 %v1414, %v1447
        %v1453 = vmin.f32 %v1449, 20.0
        %v1454 = vmin.f32 %v1450, 20.0
        %v1455 = vmin.f32 %v1451, 20.0
        %v1456 = vmin.f32 %v1452, 20.0
        %v1457 = vmul.f32 %v1453, 1.442695
        %v1458 = vpow.pop %v1457
        %v1459 = vmul.f32 %v1454, 1.442695
        %v1460 = vpow.pop %v1459
        %v1461 = vmul.f32 %v1455, 1.442695
        %v1462 = vpow.pop %v1461
        %v1463 = vmul.f32 %v1456, 1.442695
        %v1464 = vpow.pop %v1463
        %v1465 = vadd.f32 %v1458, 1.0
        %v1466 = vadd.f32 %v1460, 1.0
        %v1467 = vadd.f32 %v1462, 1.0
        %v1468 = vadd.f32 %v1464, 1.0
        %v1469 = vmul.f32 %v1465, %v1465
        %v1470 = vmul.f32 %v1466, %v1466
        %v1471 = vmul.f32 %v1467, %v1467
        %v1472 = vmul.f32 %v1468, %v1468
        %v1473 = vsub.f32 %v1469, 1.0
        %v1474 = vsub.f32 %v1470, 1.0
        %v1475 = vsub.f32 %v1471, 1.0
        %v1476 = vsub.f32 %v1472, 1.0
        %v1477 = vmul.f32 %v1449, %v1473
        %v1478 = vmul.f32 %v1450, %v1474
        %v1479 = vmul.f32 %v1451, %v1475
        %v1480 = vmul.f32 %v1452, %v1476
        %v1481 = vadd.f32 %v1469, 1.0
        %v1482 = vadd.f32 %v1470, 1.0
        %v1483 = vadd.f32 %v1471, 1.0
        %v1484 = vadd.f32 %v1472, 1.0
        %v1485 = vrcp.pop %v1481
        %v1486 = vmul.f32 %v1481, %v1485
        %v1487 = vsub.f32 1.0, %v1486
        %v1488 = vmul.f32 %v1485, %v1487
        %v1489 = vadd.f32 %v1485, %v1488
        %vm1490 = vweird.f32 %v1481
        %vm1491 = vweird.f32 %v1485
        %vm1492 = vmor %vm1490, %vm1491
        %v1493 = vsel %vm1492, %v1485, %v1489
        %v1494 = vand.u32 2147483647, %v1481
        %vm1495 = vcmp.eq.f32.partialorder %v1494, 8.507059e+37
        %v1496 = vand.u32 %v1481, 2147483648
        %v1497 = vor.u32 1.1754944e-38, %v1496
        %v1498 = vsel %vm1495, %v1497, %v1493
        %v1499 = vmul.f32 %v1477, %v1498
        %v1500 = vrcp.pop %v1482
        %v1501 = vmul.f32 %v1482, %v1500
        %v1502 = vsub.f32 1.0, %v1501
        %v1503 = vmul.f32 %v1500, %v1502
        %v1504 = vadd.f32 %v1500, %v1503
        %vm1505 = vweird.f32 %v1482
        %vm1506 = vweird.f32 %v1500
        %vm1507 = vmor %vm1505, %vm1506
        %v1508 = vsel %vm1507, %v1500, %v1504
        %v1509 = vand.u32 2147483647, %v1482
        %vm1510 = vcmp.eq.f32.partialorder %v1509, 8.507059e+37
        %v1511 = vand.u32 %v1482, 2147483648
        %v1512 = vor.u32 1.1754944e-38, %v1511
        %v1513 = vsel %vm1510, %v1512, %v1508
        %v1514 = vmul.f32 %v1478, %v1513
        %v1515 = vrcp.pop %v1483
        %v1516 = vmul.f32 %v1483, %v1515
        %v1517 = vsub.f32 1.0, %v1516
        %v1518 = vmul.f32 %v1515, %v1517
        %v1519 = vadd.f32 %v1515, %v1518
        %vm1520 = vweird.f32 %v1483
        %vm1521 = vweird.f32 %v1515
        %vm1522 = vmor %vm1520, %vm1521
        %v1523 = vsel %vm1522, %v1515, %v1519
        %v1524 = vand.u32 2147483647, %v1483
        %vm1525 = vcmp.eq.f32.partialorder %v1524, 8.507059e+37
        %v1526 = vand.u32 %v1483, 2147483648
        %v1527 = vor.u32 1.1754944e-38, %v1526
        %v1528 = vsel %vm1525, %v1527, %v1523
        %v1529 = vmul.f32 %v1479, %v1528
        %v1530 = vrcp.pop %v1484
        %v1531 = vmul.f32 %v1484, %v1530
        %v1532 = vsub.f32 1.0, %v1531
        %v1533 = vmul.f32 %v1530, %v1532
        %v1534 = vadd.f32 %v1530, %v1533
        %vm1535 = vweird.f32 %v1484
        %vm1536 = vweird.f32 %v1530
        %vm1537 = vmor %vm1535, %vm1536
        %v1538 = vsel %vm1537, %v1530, %v1534
        %v1539 = vand.u32 2147483647, %v1484
        %vm1540 = vcmp.eq.f32.partialorder %v1539, 8.507059e+37
        %v1541 = vand.u32 %v1484, 2147483648
        %v1542 = vor.u32 1.1754944e-38, %v1541
        %v1543 = vsel %vm1540, %v1542, %v1538
        %v1544 = vmul.f32 %v1480, %v1543
        %vm1545 = vcmp.gt.f32.partialorder %v1449, 20.0
        %vm1546 = vcmp.gt.f32.partialorder %v1450, 20.0
        %vm1547 = vcmp.gt.f32.partialorder %v1451, 20.0
        %vm1548 = vcmp.gt.f32.partialorder %v1452, 20.0
        %v1549 = vsel %vm1545, %v1449, %v1499
        %v1550 = vsel %vm1546, %v1450, %v1514
        %v1551 = vsel %vm1547, %v1451, %v1529
        %v1552 = vsel %vm1548, %v1452, %v1544
        %v1553 = vld [vmem:[%s5] sm:$0xf]
        %v1554 = vld [vmem:[%s6] sm:$0x1]
        %v1556 = vperm.slane %v1554, 0
        %v1559 = vsel %vm402, %v1553, 0
        %1561 = vmatpush.msra.mxu0 0.0
        %1562 = vmatpush.msra.mxu0 0.0
        %1563 = vmatpush.msra.mxu0 0.0
        %1564 = vmatpush.msra.mxu0 0.0
        %1565 = vmatpush.msra.mxu0 0.0
        %1566 = vmatpush.msra.mxu0 0.0
        %1567 = vmatpush.msra.mxu0 0.0
        %1568 = vmatpush.msra.mxu0 0.0
        %1569 = vmatpush.msra.mxu0 0.0
        %1570 = vmatpush.msra.mxu0 0.0
        %1571 = vmatpush.msra.mxu0 0.0
        %1572 = vmatpush.msra.mxu0 0.0
        %1573 = vmatpush.msra.mxu0 0.0
        %1574 = vmatpush.msra.mxu0 0.0
        %1575 = vmatpush.msra.mxu0 0.0
        %1576 = vmatpush.msra.mxu0 %v1559
        %1577 = vmatmul.f32.gmra.mxu0 %v558
        %v1578 = vpop.f32.mrf.mxu0
        %v1579 = vadd.f32 %v1556, %v1578
        %1580 = vmatmul.f32.gmra.mxu0 %v560
        %v1581 = vpop.f32.mrf.mxu0
        %v1582 = vadd.f32 %v1556, %v1581
        %1583 = vmatmul.f32.gmra.mxu0 %v562
        %v1584 = vpop.f32.mrf.mxu0
        %v1585 = vadd.f32 %v1556, %v1584
        %1586 = vmatmul.f32.gmra.mxu0 %v564
        %v1587 = vpop.f32.mrf.mxu0
        %v1588 = vadd.f32 %v1556, %v1587
        %1589 = vdwg.mxu0
        %v1590 = vmin.f32 %v1579, 20.0
        %v1591 = vmin.f32 %v1582, 20.0
        %v1592 = vmin.f32 %v1585, 20.0
        %v1593 = vmin.f32 %v1588, 20.0
        %v1594 = vmul.f32 %v1590, 1.442695
        %v1595 = vpow.pop %v1594
        %v1596 = vmul.f32 %v1591, 1.442695
        %v1597 = vpow.pop %v1596
        %v1598 = vmul.f32 %v1592, 1.442695
        %v1599 = vpow.pop %v1598
        %v1600 = vmul.f32 %v1593, 1.442695
        %v1601 = vpow.pop %v1600
        %v1602 = vadd.f32 %v1595, 1.0
        %v1603 = vadd.f32 %v1597, 1.0
        %v1604 = vadd.f32 %v1599, 1.0
        %v1605 = vadd.f32 %v1601, 1.0
        %v1606 = vmul.f32 %v1602, %v1602
        %v1607 = vmul.f32 %v1603, %v1603
        %v1608 = vmul.f32 %v1604, %v1604
        %v1609 = vmul.f32 %v1605, %v1605
        %v1610 = vsub.f32 %v1606, 1.0
        %v1611 = vsub.f32 %v1607, 1.0
        %v1612 = vsub.f32 %v1608, 1.0
        %v1613 = vsub.f32 %v1609, 1.0
        %v1614 = vmul.f32 %v1579, %v1610
        %v1615 = vmul.f32 %v1582, %v1611
        %v1616 = vmul.f32 %v1585, %v1612
        %v1617 = vmul.f32 %v1588, %v1613
        %v1618 = vadd.f32 %v1606, 1.0
        %v1619 = vadd.f32 %v1607, 1.0
        %v1620 = vadd.f32 %v1608, 1.0
        %v1621 = vadd.f32 %v1609, 1.0
        %v1622 = vrcp.pop %v1618
        %v1623 = vmul.f32 %v1618, %v1622
        %v1624 = vsub.f32 1.0, %v1623
        %v1625 = vmul.f32 %v1622, %v1624
        %v1626 = vadd.f32 %v1622, %v1625
        %vm1627 = vweird.f32 %v1618
        %vm1628 = vweird.f32 %v1622
        %vm1629 = vmor %vm1627, %vm1628
        %v1630 = vsel %vm1629, %v1622, %v1626
        %v1631 = vand.u32 2147483647, %v1618
        %vm1632 = vcmp.eq.f32.partialorder %v1631, 8.507059e+37
        %v1633 = vand.u32 %v1618, 2147483648
        %v1634 = vor.u32 1.1754944e-38, %v1633
        %v1635 = vsel %vm1632, %v1634, %v1630
        %v1636 = vmul.f32 %v1614, %v1635
        %v1637 = vrcp.pop %v1619
        %v1638 = vmul.f32 %v1619, %v1637
        %v1639 = vsub.f32 1.0, %v1638
        %v1640 = vmul.f32 %v1637, %v1639
        %v1641 = vadd.f32 %v1637, %v1640
        %vm1642 = vweird.f32 %v1619
        %vm1643 = vweird.f32 %v1637
        %vm1644 = vmor %vm1642, %vm1643
        %v1645 = vsel %vm1644, %v1637, %v1641
        %v1646 = vand.u32 2147483647, %v1619
        %vm1647 = vcmp.eq.f32.partialorder %v1646, 8.507059e+37
        %v1648 = vand.u32 %v1619, 2147483648
        %v1649 = vor.u32 1.1754944e-38, %v1648
        %v1650 = vsel %vm1647, %v1649, %v1645
        %v1651 = vmul.f32 %v1615, %v1650
        %v1652 = vrcp.pop %v1620
        %v1653 = vmul.f32 %v1620, %v1652
        %v1654 = vsub.f32 1.0, %v1653
        %v1655 = vmul.f32 %v1652, %v1654
        %v1656 = vadd.f32 %v1652, %v1655
        %vm1657 = vweird.f32 %v1620
        %vm1658 = vweird.f32 %v1652
        %vm1659 = vmor %vm1657, %vm1658
        %v1660 = vsel %vm1659, %v1652, %v1656
        %v1661 = vand.u32 2147483647, %v1620
        %vm1662 = vcmp.eq.f32.partialorder %v1661, 8.507059e+37
        %v1663 = vand.u32 %v1620, 2147483648
        %v1664 = vor.u32 1.1754944e-38, %v1663
        %v1665 = vsel %vm1662, %v1664, %v1660
        %v1666 = vmul.f32 %v1616, %v1665
        %v1667 = vrcp.pop %v1621
        %v1668 = vmul.f32 %v1621, %v1667
        %v1669 = vsub.f32 1.0, %v1668
        %v1670 = vmul.f32 %v1667, %v1669
        %v1671 = vadd.f32 %v1667, %v1670
        %vm1672 = vweird.f32 %v1621
        %vm1673 = vweird.f32 %v1667
        %vm1674 = vmor %vm1672, %vm1673
        %v1675 = vsel %vm1674, %v1667, %v1671
        %v1676 = vand.u32 2147483647, %v1621
        %vm1677 = vcmp.eq.f32.partialorder %v1676, 8.507059e+37
        %v1678 = vand.u32 %v1621, 2147483648
        %v1679 = vor.u32 1.1754944e-38, %v1678
        %v1680 = vsel %vm1677, %v1679, %v1675
        %v1681 = vmul.f32 %v1617, %v1680
        %vm1682 = vcmp.gt.f32.partialorder %v1579, 20.0
        %vm1683 = vcmp.gt.f32.partialorder %v1582, 20.0
        %vm1684 = vcmp.gt.f32.partialorder %v1585, 20.0
        %vm1685 = vcmp.gt.f32.partialorder %v1588, 20.0
        %v1686 = vsel %vm1682, %v1579, %v1636
        %v1687 = vsel %vm1683, %v1582, %v1651
        %v1688 = vsel %vm1684, %v1585, %v1666
        %v1689 = vsel %vm1685, %v1588, %v1681
        %v1690 = vadd.f32 %v1549, %v1686
        %v1691 = vadd.f32 %v1550, %v1687
        %v1692 = vadd.f32 %v1551, %v1688
        %v1693 = vadd.f32 %v1552, %v1689
        %1694 = vst.msk [vmem:[%s311] sm:$0xff] %vm1046, %v1690
        %1695 = vst.msk [vmem:[%s311 + $0x8] sm:$0xff] %vm1046, %v1691
        %1696 = vst.msk [vmem:[%s311 + $0x10] sm:$0xff] %vm1046, %v1692
        %1697 = vst.msk [vmem:[%s311 + $0x18] sm:$0xff] %vm1046, %v1693
        %s1698 = sand.u32 %s205, 1
        %s1699 = scalar_lea.sflag [#allocation4], %s1698
        %s1700 = sand.u32 %s205, 1
        %s1701 = smul.addr %s1700, 32
        %s1702 = scalar_lea.vmem [#allocation3], %s1701
        // Predicated region
        $region57: #{tpu_custom_call.1} parent=47 // pred_check
          %p1703 = pneg %p215
        $region58: #{tpu_custom_call.1} parent=47 // pred_check_branch
          %1705 = sbr.rel (%p1703) target = $region60
        $region59: #{tpu_custom_call.1} parent=47 // pred_region
          %s1706 = smul.u32 4, %s26
          %1708 = vsyncadd %s1699, 0
          %s1709 = smul.addr %s25, 8
          %s1710 = sadd.s32 %s1706, %s1709
          %s1711 = smul.addr %s1710, 8
          %s1712 = scalar_lea.hbm %s7, %s1711
          %s1713 = sshll.u32 %s1702, 4
          %s1714 = int_to_ptr.vmem [resolvable:$true] %s1713
          %s1715 = sshll.u32 %s1712, 4
          %s1716 = int_to_ptr.hbm [resolvable:$true] %s1715
          %1721 = dma.vmem_to_hbm [thread:$0]  %s1714, 512, %s1716, %s1699, 128, 128, 8
        $region60: #{tpu_custom_call.1} parent=47 // pred_fallthru
          _
      $region48: #{tpu_custom_call.1} parent=5 // pred_fallthru
        _
      %p1722 = scmp.le.s32.totalorder 2, %s16
      // Predicated region
      $region61: #{tpu_custom_call.1} parent=5 // pred_check
        %p1723 = pneg %p1722
      $region62: #{tpu_custom_call.1} parent=5 // pred_check_branch
        %1725 = sbr.rel (%p1723) target = $region64
      $region63: #{tpu_custom_call.1} parent=5 // pred_region
        %s1726 = ssub.s32 %s16, 2
        // Predicated region
        $region65: #{tpu_custom_call.1} parent=63 // pred_check
          %p1727 = pneg %p221
        $region66: #{tpu_custom_call.1} parent=63 // pred_check_branch
          %1729 = sbr.rel (%p1727) target = $region68
        $region67: #{tpu_custom_call.1} parent=63 // pred_region
          %s1730 = sand.u32 %s206, 1
          %s1731 = scalar_lea.sflag [#allocation4], %s1730
          %s1732 = sand.u32 %s206, 1
          %s1733 = smul.addr %s1732, 32
          %s1734 = scalar_lea.vmem [#allocation3], %s1733
          %1736 = dma.done %s1731, 512
        $region68: #{tpu_custom_call.1} parent=63 // pred_fallthru
          _
      $region64: #{tpu_custom_call.1} parent=5 // pred_fallthru
        _
    $region6: #{tpu_custom_call.1} parent=1 // loop_footer
      %s20 = sadd.s32 1, %s16
    $region7: #{tpu_custom_call.1} parent=1 // loop_footer_branch
      %15 = sbr.rel target = $region3
    $region8: #{tpu_custom_call.1} parent=1 // loop_exit
      _
    %1737 = vsyncpa [#allocation4], 1
    %s1738 = scalar_lea.sflag [#allocation4], 1
    %1739 = vsyncpa %s1738, 1

</llo_original>
